<compile_context>
chip_gen: v7x
topology: tpu7x:2x2x1
jax: 0.10.0
libtpu: 0.0.40
codegen_flags: <defaults>
</compile_context>

<pallas_src>
import functools

import jax
import jax.numpy as jnp
import numpy as np
from jax.experimental import pallas as pl
from jax.experimental.pallas import tpu as pltpu

_F32 = jnp.float32
_SMEM = pl.BlockSpec(memory_space=pltpu.MemorySpace.SMEM)


def _rup(x, m):
    return ((x + m - 1) // m) * m


def _pad2(a, rows, cols):
    return jnp.pad(a, ((0, rows - a.shape[0]), (0, cols - a.shape[1])))


# ----------------------------------------------------------------------------
# Pallas kernels
# ----------------------------------------------------------------------------
def _gin_layer_kernel(et_start_ref, et_count_ref,          # scalar prefetch
                      dst_ref, msg_ref, h_ref,
                      w1_ref, b1_ref, s1_ref, t1_ref,
                      w2_ref, b2_ref, sn_ref, tn_ref, eps_ref,
                      hout_ref, agg_acc,
                      *, node_tile, edge_tile, apply_relu, mm_dtype):
    # grid = (node tiles i, block-sparse edge-tile step j within tile i's
    # CSR destination range); j is the scatter-reduction axis.
    i = pl.program_id(0)
    j = pl.program_id(1)

    @pl.when(j == 0)
    def _():
        agg_acc[...] = jnp.zeros_like(agg_acc)

    # Block-sparse scatter: only edge tiles inside this node tile's CSR range
    # contribute.  Steps past the per-node-tile count are skipped (the clamped
    # index_map keeps the block index constant so no re-DMA happens either).
    @pl.when(j < et_count_ref[i])
    def _():
        node_ids = i * node_tile + jax.lax.broadcasted_iota(
            jnp.int32, (node_tile, edge_tile), 0)
        scatter_mask = (dst_ref[...] == node_ids).astype(mm_dtype)   # (TN, TE)
        msg = jnp.maximum(msg_ref[...], 0.0).astype(mm_dtype)        # GIN edge ReLU
        agg_acc[...] += jnp.dot(scatter_mask, msg,
                                preferred_element_type=_F32)

    @pl.when(j == pl.num_programs(1) - 1)
    def _():
        pre = (1.0 + eps_ref[0]) * h_ref[...] + agg_acc[...]
        # GIN MLP: Linear -> BN(eval, folded affine) -> ReLU -> Linear
        z1 = jnp.dot(pre, w1_ref[...], preferred_element_type=_F32) + b1_ref[...]
        z1 = jnp.maximum(z1 * s1_ref[...] + t1_ref[...], 0.0)
        z2 = jnp.dot(z1, w2_ref[...], preferred_element_type=_F32) + b2_ref[...]
        # per-layer node BatchNorm (eval, folded affine) + optional ReLU
        hbn = z2 * sn_ref[...] + tn_ref[...]
        hout_ref[...] = jnp.maximum(hbn, 0.0) if apply_relu else hbn


def _vn_update_kernel(batch_ref, h_ref, vn_ref,
                      w1_ref, b1_ref, s1_ref, t1_ref,
                      w2_ref, b2_ref, s2_ref, t2_ref,
                      vn_out_ref, pooled_acc,
                      *, node_tile, g_pad, n_valid_tiles, mm_dtype):
    # grid = (node tiles,); sum-pool reduction over node tiles, MLP at the end.
    # TODO(synk): on v7x a leading "parallel" axis (split node tiles into two
    # partial accumulators + tiny combine) would use both TensorCores.
    n = pl.program_id(0)

    @pl.when(n == 0)
    def _():
        pooled_acc[...] = jnp.zeros_like(pooled_acc)

    @pl.when(n < n_valid_tiles)                 # skip fully-padded tail tiles
    def _():
        graph_ids = jax.lax.broadcasted_iota(jnp.int32, (g_pad, node_tile), 0)
        pool_mask = (batch_ref[...] == graph_ids).astype(mm_dtype)   # (G, TN)
        pooled_acc[...] += jnp.dot(pool_mask, h_ref[...].astype(mm_dtype),
                                   preferred_element_type=_F32)

    @pl.when(n == pl.num_programs(0) - 1)
    def _():
        # virtual-node update: MLP(global_add_pool(h_in, batch) + vn)
        tmp = pooled_acc[...] + vn_ref[...]
        z1 = jnp.dot(tmp, w1_ref[...], preferred_element_type=_F32) + b1_ref[...]
        z1 = jnp.maximum(z1 * s1_ref[...] + t1_ref[...], 0.0)
        z2 = jnp.dot(z1, w2_ref[...], preferred_element_type=_F32) + b2_ref[...]
        vn_out_ref[...] = jnp.maximum(z2 * s2_ref[...] + t2_ref[...], 0.0)


def _pool_pred_kernel(batch_ref, h_ref, invcnt_ref, w_ref, b_ref,
                      out_ref, pooled_acc,
                      *, node_tile, g_pad, n_valid_tiles, mm_dtype):
    # grid = (node tiles,); mean pool (sum * 1/count) + linear prediction head.
    n = pl.program_id(0)

    @pl.when(n == 0)
    def _():
        pooled_acc[...] = jnp.zeros_like(pooled_acc)

    @pl.when(n < n_valid_tiles)
    def _():
        graph_ids = jax.lax.broadcasted_iota(jnp.int32, (g_pad, node_tile), 0)
        pool_mask = (batch_ref[...] == graph_ids).astype(mm_dtype)
        pooled_acc[...] += jnp.dot(pool_mask, h_ref[...].astype(mm_dtype),
                                   preferred_element_type=_F32)

    @pl.when(n == pl.num_programs(0) - 1)
    def _():
        hg = pooled_acc[...] * invcnt_ref[...]        # global mean pool
        out_ref[...] = jnp.dot(hg, w_ref[...],
                               preferred_element_type=_F32) + b_ref[...]


# ----------------------------------------------------------------------------
# pallas_call wrappers
# ----------------------------------------------------------------------------
def gin_layer(h_in, pre_msg, dst_row, et_start, et_count, max_steps, lp, *,
              node_tile, edge_tile, apply_relu, mm_dtype):
    """Fused GIN layer: relu(x_src+eemb) + block-sparse scatter + GIN MLP."""
    n_pad, d = h_in.shape
    n_nt = n_pad // node_tile

    def edge_map(i, j, start_ref, count_ref):
        jj = jnp.minimum(j, jnp.maximum(count_ref[i] - 1, 0))
        return (start_ref[i] + jj, 0)

    def edge_row_map(i, j, start_ref, count_ref):
        jj = jnp.minimum(j, jnp.maximum(count_ref[i] - 1, 0))
        return (0, start_ref[i] + jj)

    def node_map(i, j, start_ref, count_ref):
        return (i, 0)

    def fixed(i, j, start_ref, count_ref):
        return (0, 0)

    kern = functools.partial(_gin_layer_kernel, node_tile=node_tile,
                             edge_tile=edge_tile, apply_relu=apply_relu,
                             mm_dtype=mm_dtype)
    return pl.pallas_call(
        kern,
        out_shape=jax.ShapeDtypeStruct((n_pad, d), _F32),
        grid_spec=pltpu.PrefetchScalarGridSpec(
            num_scalar_prefetch=2,
            grid=(n_nt, max_steps),
            in_specs=[
                pl.BlockSpec((1, edge_tile), edge_row_map),  # dst indices
                pl.BlockSpec((edge_tile, d), edge_map),      # h_in[src] + eemb
                pl.BlockSpec((node_tile, d), node_map),      # h_in (self term)
                pl.BlockSpec(lp["w1"].shape, fixed),
                pl.BlockSpec(lp["b1"].shape, fixed),
                pl.BlockSpec(lp["s1"].shape, fixed),
                pl.BlockSpec(lp["t1"].shape, fixed),
                pl.BlockSpec(lp["w2"].shape, fixed),
                pl.BlockSpec(lp["b2"].shape, fixed),
                pl.BlockSpec(lp["sn"].shape, fixed),
                pl.BlockSpec(lp["tn"].shape, fixed),
                _SMEM,                                       # eps scalar
            ],
            out_specs=pl.BlockSpec((node_tile, d), node_map),
            scratch_shapes=[pltpu.VMEM((node_tile, d), _F32)],
        ),
        compiler_params=pltpu.CompilerParams(
            dimension_semantics=("parallel", "arbitrary")),
    )(et_start, et_count, dst_row, pre_msg, h_in,
      lp["w1"], lp["b1"], lp["s1"], lp["t1"],
      lp["w2"], lp["b2"], lp["sn"], lp["tn"], lp["eps"])


def vn_update(h_in, batch_row, vn, vp, *, node_tile, n_valid_tiles, mm_dtype):
    n_pad, d = h_in.shape
    g_pad = vn.shape[0]
    nn = n_pad // node_tile
    kern = functools.partial(_vn_update_kernel, node_tile=node_tile,
                             g_pad=g_pad, n_valid_tiles=n_valid_tiles,
                             mm_dtype=mm_dtype)
    return pl.pallas_call(
        kern,
        out_shape=jax.ShapeDtypeStruct((g_pad, d), _F32),
        grid=(nn,),
        in_specs=[
            pl.BlockSpec((1, node_tile), lambda n: (0, n)),      # batch indices
            pl.BlockSpec((node_tile, d), lambda n: (n, 0)),      # h_in
            pl.BlockSpec((g_pad, d), lambda n: (0, 0)),          # vn
            pl.BlockSpec(vp["w1"].shape, lambda n: (0, 0)),
            pl.BlockSpec(vp["b1"].shape, lambda n: (0, 0)),
            pl.BlockSpec(vp["s1"].shape, lambda n: (0, 0)),
            pl.BlockSpec(vp["t1"].shape, lambda n: (0, 0)),
            pl.BlockSpec(vp["w2"].shape, lambda n: (0, 0)),
            pl.BlockSpec(vp["b2"].shape, lambda n: (0, 0)),
            pl.BlockSpec(vp["s2"].shape, lambda n: (0, 0)),
            pl.BlockSpec(vp["t2"].shape, lambda n: (0, 0)),
        ],
        out_specs=pl.BlockSpec((g_pad, d), lambda n: (0, 0)),
        scratch_shapes=[pltpu.VMEM((g_pad, d), _F32)],
        compiler_params=pltpu.CompilerParams(
            dimension_semantics=("arbitrary",)),
    )(batch_row, h_in, vn,
      vp["w1"], vp["b1"], vp["s1"], vp["t1"],
      vp["w2"], vp["b2"], vp["s2"], vp["t2"])


def pool_pred(h, batch_row, inv_counts, pred_w, pred_b, *,
              node_tile, n_valid_tiles, mm_dtype):
    n_pad, d = h.shape
    g_pad = inv_counts.shape[0]
    t_pad = pred_w.shape[1]
    nn = n_pad // node_tile
    kern = functools.partial(_pool_pred_kernel, node_tile=node_tile,
                             g_pad=g_pad, n_valid_tiles=n_valid_tiles,
                             mm_dtype=mm_dtype)
    return pl.pallas_call(
        kern,
        out_shape=jax.ShapeDtypeStruct((g_pad, t_pad), _F32),
        grid=(nn,),
        in_specs=[
            pl.BlockSpec((1, node_tile), lambda n: (0, n)),      # batch indices
            pl.BlockSpec((node_tile, d), lambda n: (n, 0)),      # h (final)
            pl.BlockSpec((g_pad, 1), lambda n: (0, 0)),          # 1/counts
            pl.BlockSpec(pred_w.shape, lambda n: (0, 0)),
            pl.BlockSpec(pred_b.shape, lambda n: (0, 0)),
        ],
        out_specs=pl.BlockSpec((g_pad, t_pad), lambda n: (0, 0)),
        scratch_shapes=[pltpu.VMEM((g_pad, d), _F32)],
        compiler_params=pltpu.CompilerParams(
            dimension_semantics=("arbitrary",)),
    )(batch_row, h, inv_counts, pred_w, pred_b)


# ----------------------------------------------------------------------------
# Full forward (Pallas kernels + small XLA glue for integer/row gathers)
# ----------------------------------------------------------------------------
def gnn_forward(params, x_atom, edge_index, edge_attr, batch, num_graphs,
                *, node_tile=256, edge_tile=256, mask_mm_dtype=_F32):
    N = int(x_atom.shape[0])
    E = int(edge_index.shape[1])
    D = params["emb_dim"]
    HID = params["gin_layers"][0]["w1"].shape[1]
    T = params["pred_w"].shape[1]
    d_pad = _rup(D, 128)
    hid_pad = _rup(HID, 128)
    t_pad = _rup(T, 128)
    n_pad = _rup(max(N, node_tile), node_tile)
    e_pad = _rup(max(E, edge_tile), edge_tile)
    g_pad = _rup(max(num_graphs, 8), 8)
    n_node_tiles = n_pad // node_tile
    n_valid_node_tiles = -(-N // node_tile)

    # ---------------- host-side CSR preprocessing (concrete inputs) ---------
    src_np = np.asarray(edge_index[0]).astype(np.int64)
    dst_np = np.asarray(edge_index[1]).astype(np.int64)
    batch_np = np.asarray(batch).astype(np.int64)
    assert src_np.min() >= 0 and dst_np.min() >= 0 and batch_np.min() >= 0, \
        "node / graph ids must be non-negative (padding uses -1 sentinels)"

    order = np.argsort(dst_np, kind="stable")          # CSR: sort edges by dst
    src_s = src_np[order]
    dst_s = dst_np[order]
    ea_s = np.asarray(edge_attr)[order]

    # Per-node-tile contiguous range of edge tiles (block-sparse scatter).
    et_start_np = np.zeros((n_node_tiles,), np.int32)
    et_count_np = np.zeros((n_node_tiles,), np.int32)
    for i in range(n_node_tiles):
        lo = int(np.searchsorted(dst_s, i * node_tile, side="left"))
        hi = int(np.searchsorted(dst_s, (i + 1) * node_tile, side="left"))
        if hi > lo:
            t_lo = lo // edge_tile
            t_hi = (hi - 1) // edge_tile + 1
            et_start_np[i] = t_lo
            et_count_np[i] = t_hi - t_lo
    max_steps = max(int(et_count_np.max()), 1)
    et_start = jnp.asarray(et_start_np)
    et_count = jnp.asarray(et_count_np)

    dst_pad = np.full((e_pad,), -1, np.int32)
    dst_pad[:E] = dst_s
    dst_row = jnp.asarray(dst_pad).reshape(1, e_pad)
    src_pad = np.zeros((e_pad,), np.int32)
    src_pad[:E] = src_s
    src_idx = jnp.asarray(src_pad)

    batch_p = jnp.pad(jnp.asarray(batch, jnp.int32), (0, n_pad - N),
                      constant_values=-1)
    batch_row = batch_p.reshape(1, n_pad)
    batch_clip = jnp.clip(batch_p, 0, num_graphs - 1)
    valid_col = (jnp.arange(n_pad) < N).astype(_F32).reshape(n_pad, 1)
    counts = jnp.zeros((g_pad,), _F32).at[jnp.asarray(batch, jnp.int32)].add(1.0)
    inv_counts = jnp.where(counts > 0, 1.0 / counts, 0.0).reshape(g_pad, 1)

    # ------------- one-time parameter padding (hoisted out of the loop) -----
    num_layer = len(params["gin_layers"])
    gin_pads, eemb_pads = [], []
    for lp in params["gin_layers"]:
        gin_pads.append({
            "w1": _pad2(lp["w1"], d_pad, hid_pad),
            "b1": _pad2(lp["b1"], 1, hid_pad),
            "s1": _pad2(lp["s1"], 1, hid_pad),
            "t1": _pad2(lp["t1"], 1, hid_pad),
            "w2": _pad2(lp["w2"], hid_pad, d_pad),
            "b2": _pad2(lp["b2"], 1, d_pad),
            "sn": _pad2(lp["sn"], 1, d_pad),
            "tn": _pad2(lp["tn"], 1, d_pad),
            "eps": lp["eps"],
        })
        # TODO(synk): BondEncoder integer embedding lookups stay in XLA glue.
        eemb = sum(lp["bond_emb"][i][jnp.asarray(ea_s[:, i])]
                   for i in range(ea_s.shape[1]))
        eemb_pads.append(_pad2(eemb, e_pad, d_pad))
    vn_pads = []
    for vp in params["vn_layers"]:
        vn_pads.append({
            "w1": _pad2(vp["w1"], d_pad, hid_pad),
            "b1": _pad2(vp["b1"], 1, hid_pad),
            "s1": _pad2(vp["s1"], 1, hid_pad),
            "t1": _pad2(vp["t1"], 1, hid_pad),
            "w2": _pad2(vp["w2"], hid_pad, d_pad),
            "b2": _pad2(vp["b2"], 1, d_pad),
            "s2": _pad2(vp["s2"], 1, d_pad),
            "t2": _pad2(vp["t2"], 1, d_pad),
        })
    pred_w = _pad2(params["pred_w"], d_pad, t_pad)
    pred_b = _pad2(params["pred_b"], 1, t_pad)

    # TODO(synk): AtomEncoder integer embedding lookups stay in XLA glue.
    h = sum(params["atom_emb"][i][x_atom[:, i]] for i in range(x_atom.shape[1]))
    h = _pad2(h, n_pad, d_pad)

    vn = jnp.zeros((g_pad, d_pad), _F32)   # Embedding(1, D) initialized to 0
    for layer in range(num_layer):
        lp = gin_pads[layer]
        # h_in = h + virtual_node_embedding[batch]; padded rows zeroed so no
        # garbage can leak through the 0/1 masks (correctness-review fix).
        h_in = (h + vn[batch_clip]) * valid_col
        # O(E*D) source-row gather (XLA glue) replaces the old O(E*N*D)
        # gather mask-matmul kernel; relu happens inside the fused kernel.
        # TODO(synk): an in-kernel DMA gather over a src-sorted ordering would
        # move this into Pallas too, but needs a second edge permutation.
        pre_msg = h_in[src_idx] + eemb_pads[layer]
        h_new = gin_layer(h_in, pre_msg, dst_row, et_start, et_count,
                          max_steps, lp, node_tile=node_tile,
                          edge_tile=edge_tile,
                          apply_relu=(layer < num_layer - 1),
                          mm_dtype=mask_mm_dtype)
        if layer < num_layer - 1:
            vn = vn_update(h_in, batch_row, vn, vn_pads[layer],
                           node_tile=node_tile,
                           n_valid_tiles=n_valid_node_tiles,
                           mm_dtype=mask_mm_dtype)
        h = h_new   # JK == "last", residual == False

    out = pool_pred(h, batch_row, inv_counts, pred_w, pred_b,
                    node_tile=node_tile, n_valid_tiles=n_valid_node_tiles,
                    mm_dtype=mask_mm_dtype)
    return out[:num_graphs, :T]


# Pure-JAX reference (scatter/segment based) for verification.
def gnn_forward_ref(params, x_atom, edge_index, edge_attr, batch, num_graphs):
    N = x_atom.shape[0]
    h = sum(params["atom_emb"][i][x_atom[:, i]] for i in range(x_atom.shape[1]))
    src, dst = edge_index[0], edge_index[1]
    vn = jnp.zeros((num_graphs, params["emb_dim"]), _F32)
    num_layer = len(params["gin_layers"])
    for layer in range(num_layer):
        lp = params["gin_layers"][layer]
        eemb = sum(lp["bond_emb"][i][edge_attr[:, i]]
                   for i in range(edge_attr.shape[1]))
        h_in = h + vn[batch]
        msg = jax.nn.relu(h_in[src] + eemb)
        agg = jax.ops.segment_sum(msg, dst, num_segments=N)
        pre = (1.0 + lp["eps"][0]) * h_in + agg
        z1 = jax.nn.relu((pre @ lp["w1"] + lp["b1"]) * lp["s1"] + lp["t1"])
        z2 = (z1 @ lp["w2"] + lp["b2"]) * lp["sn"] + lp["tn"]
        h = jax.nn.relu(z2) if layer < num_layer - 1 else z2
        if layer < num_layer - 1:
            vp = params["vn_layers"][layer]
            pooled = jax.ops.segment_sum(h_in, batch,
                                         num_segments=num_graphs) + vn
            a1 = jax.nn.relu((pooled @ vp["w1"] + vp["b1"]) * vp["s1"] + vp["t1"])
            vn = jax.nn.relu((a1 @ vp["w2"] + vp["b2"]) * vp["s2"] + vp["t2"])
    counts = jax.ops.segment_sum(jnp.ones((N, 1), _F32), batch,
                                 num_segments=num_graphs)
    hg = jax.ops.segment_sum(h, batch, num_segments=num_graphs) / counts
    return hg @ params["pred_w"] + params["pred_b"]


# ----------------------------------------------------------------------------
# Deterministic synthetic parameters (shapes from GNN.__init__, gin + virtual node)
# ----------------------------------------------------------------------------
def make_params(key, emb_dim, num_layer, num_tasks,
                atom_vocab=(10, 10, 10), bond_vocab=(5, 5, 5)):
    keys = iter(jax.random.split(key, 512))

    def nrm(shape, scale=0.2):
        return scale * jax.random.normal(next(keys), shape, _F32)

    def bn(dim):
        gamma = 1.0 + nrm((dim,), 0.1)
        beta = nrm((dim,), 0.1)
        mean = nrm((dim,), 0.1)
        var = jnp.abs(1.0 + nrm((dim,), 0.1))
        scale = gamma / jnp.sqrt(var + 1e-5)
        shift = beta - mean * scale
        return scale.reshape(1, dim), shift.reshape(1, dim)

    params = {"emb_dim": emb_dim}
    params["atom_emb"] = [nrm((v, emb_dim)) for v in atom_vocab]

    gin_layers = []
    for _ in range(num_layer):
        s1, t1 = bn(2 * emb_dim)
        sn, tn = bn(emb_dim)
        gin_layers.append({
            "bond_emb": [nrm((v, emb_dim)) for v in bond_vocab],
            "w1": nrm((emb_dim, 2 * emb_dim)), "b1": nrm((1, 2 * emb_dim)),
            "s1": s1, "t1": t1,
            "w2": nrm((2 * emb_dim, emb_dim)), "b2": nrm((1, emb_dim)),
            "sn": sn, "tn": tn,
            "eps": jnp.zeros((1,), _F32),  # GIN eps parameter, init 0
        })
    params["gin_layers"] = gin_layers

    vn_layers = []
    for _ in range(num_layer - 1):
        s1, t1 = bn(2 * emb_dim)
        s2, t2 = bn(emb_dim)
        vn_layers.append({
            "w1": nrm((emb_dim, 2 * emb_dim)), "b1": nrm((1, 2 * emb_dim)),
            "s1": s1, "t1": t1,
            "w2": nrm((2 * emb_dim, emb_dim)), "b2": nrm((1, emb_dim)),
            "s2": s2, "t2": t2,
        })
    params["vn_layers"] = vn_layers

    params["pred_w"] = nrm((emb_dim, num_tasks))
    params["pred_b"] = nrm((1, num_tasks))
    return params


if __name__ == "__main__":
    emb_dim, num_layer, num_tasks = 32, 3, 3
    key = jax.random.PRNGKey(0)
    kp, kx, ke = jax.random.split(key, 3)
    params = make_params(kp, emb_dim, num_layer, num_tasks)

    # 6 graphs, 48 nodes each; bidirectional ring edges within each graph.
    # Big enough that with 256-wide tiles there are 2 node tiles and 3 edge
    # tiles, with different per-node-tile edge-tile counts, so the CSR
    # block-sparse scatter and its pl.when skip path are actually exercised.
    n_per, num_graphs = 48, 6
    N = n_per * num_graphs
    src, dst = [], []
    for g in range(num_graphs):
        base = g * n_per
        for i in range(n_per):
            a, b = base + i, base + (i + 1) % n_per
            src += [a, b]
            dst += [b, a]
    edge_index = jnp.array([src, dst], jnp.int32)
    E = edge_index.shape[1]
    x_atom = jax.random.randint(kx, (N, 3), 0, 10, jnp.int32)
    edge_attr = jax.random.randint(ke, (E, 3), 0, 5, jnp.int32)
    batch = jnp.repeat(jnp.arange(num_graphs, dtype=jnp.int32), n_per)

    out = gnn_forward(params, x_atom, edge_index, edge_attr, batch, num_graphs)
    out = jax.block_until_ready(out)
    ref = gnn_forward_ref(params, x_atom, edge_index, edge_attr, batch,
                          num_graphs)

    assert out.shape == (num_graphs, num_tasks)
    np.testing.assert_allclose(np.asarray(out), np.asarray(ref),
                               rtol=1e-3, atol=1e-3)
    print("KERNEL_OK")
</pallas_src>

<mosaic_0001>
module attributes {stable_mosaic.version = 11 : i64} {
  func.func @_gin_layer_kernel(%arg0: i32, %arg1: i32, %arg2: memref<2xi32, #tpu.memory_space<smem>>, %arg3: memref<2xi32, #tpu.memory_space<smem>>, %arg4: memref<1x256xi32, #tpu.memory_space<vmem>>, %arg5: memref<256x128xf32, #tpu.memory_space<vmem>>, %arg6: memref<256x128xf32, #tpu.memory_space<vmem>>, %arg7: memref<128x128xf32, #tpu.memory_space<vmem>>, %arg8: memref<1x128xf32, #tpu.memory_space<vmem>>, %arg9: memref<1x128xf32, #tpu.memory_space<vmem>>, %arg10: memref<1x128xf32, #tpu.memory_space<vmem>>, %arg11: memref<128x128xf32, #tpu.memory_space<vmem>>, %arg12: memref<1x128xf32, #tpu.memory_space<vmem>>, %arg13: memref<1x128xf32, #tpu.memory_space<vmem>>, %arg14: memref<1x128xf32, #tpu.memory_space<vmem>>, %arg15: memref<1xf32, #tpu.memory_space<smem>>, %arg16: memref<256x128xf32, #tpu.memory_space<vmem>>, %arg17: memref<256x128xf32, #tpu.memory_space<vmem>>) attributes {dimension_semantics = [#tpu.dimension_semantics<parallel>, #tpu.dimension_semantics<arbitrary>], iteration_bounds = array<i64: 2, 2>, scalar_prefetch = 2 : i64, scratch_operands = 1 : i64, tpu.core_type = #tpu.core_type<tc>, window_params = [{transform_indices = @transform_0, window_bounds = array<i64: 1, 256>}, {transform_indices = @transform_1, window_bounds = array<i64: 256, 128>}, {transform_indices = @transform_2, window_bounds = array<i64: 256, 128>}, {pipeline_mode = #tpu.pipeline_mode<synchronous>, transform_indices = @transform_3, window_bounds = array<i64: 128, 128>}, {pipeline_mode = #tpu.pipeline_mode<synchronous>, transform_indices = @transform_4, window_bounds = array<i64: 1, 128>}, {pipeline_mode = #tpu.pipeline_mode<synchronous>, transform_indices = @transform_5, window_bounds = array<i64: 1, 128>}, {pipeline_mode = #tpu.pipeline_mode<synchronous>, transform_indices = @transform_6, window_bounds = array<i64: 1, 128>}, {pipeline_mode = #tpu.pipeline_mode<synchronous>, transform_indices = @transform_7, window_bounds = array<i64: 128, 128>}, {pipeline_mode = #tpu.pipeline_mode<synchronous>, transform_indices = @transform_8, window_bounds = array<i64: 1, 128>}, {pipeline_mode = #tpu.pipeline_mode<synchronous>, transform_indices = @transform_9, window_bounds = array<i64: 1, 128>}, {pipeline_mode = #tpu.pipeline_mode<synchronous>, transform_indices = @transform_10, window_bounds = array<i64: 1, 128>}, {transform_indices = @transform_11, window_bounds = array<i64: 1>}, {transform_indices = @transform_12, window_bounds = array<i64: 256, 128>}]} {
    %c0_i32 = arith.constant 0 : i32
    %0 = arith.cmpi eq, %arg1, %c0_i32 : i32
    %1 = arith.extui %0 : i1 to i32
    %c0_i32_0 = arith.constant 0 : i32
    %2 = arith.cmpi ne, %1, %c0_i32_0 : i32
    scf.if %2 {
      %cst = arith.constant 0.000000e+00 : f32
      %11 = vector.broadcast %cst : f32 to vector<256x128xf32>
      %c0 = arith.constant 0 : index
      %c0_3 = arith.constant 0 : index
      %12 = vector.load %arg17[%c0, %c0_3] : memref<256x128xf32, #tpu.memory_space<vmem>>, vector<256x128xf32>
      tpu.vector_store %arg17[%c0, %c0_3], %11 {strides = array<i32>} : memref<256x128xf32, #tpu.memory_space<vmem>>, vector<256x128xf32>,
    } else {
    }
    %3 = arith.index_cast %arg0 : i32 to index
    %4 = memref.load %arg3[%3] : memref<2xi32, #tpu.memory_space<smem>>
    %5 = arith.cmpi slt, %arg1, %4 : i32
    %6 = arith.extui %5 : i1 to i32
    %c0_i32_1 = arith.constant 0 : i32
    %7 = arith.cmpi ne, %6, %c0_i32_1 : i32
    scf.if %7 {
      %c256_i32 = arith.constant 256 : i32
      %11 = arith.muli %arg0, %c256_i32 : i32
      %12 = tpu.iota {dimensions = array<i32: 0>} : vector<256x256xi32>
      %13 = vector.broadcast %11 : i32 to vector<256x256xi32>
      %14 = arith.addi %13, %12 : vector<256x256xi32>
      %c0 = arith.constant 0 : index
      %c0_3 = arith.constant 0 : index
      %15 = vector.load %arg4[%c0, %c0_3] : memref<1x256xi32, #tpu.memory_space<vmem>>, vector<1x256xi32>
      %16 = vector.broadcast %15 : vector<1x256xi32> to vector<256x256xi32>
      %17 = arith.cmpi eq, %16, %14 : vector<256x256xi32>
      %18 = arith.extui %17 : vector<256x256xi1> to vector<256x256xi32>
      %19 = arith.sitofp %18 : vector<256x256xi32> to vector<256x256xf32>
      %c0_4 = arith.constant 0 : index
      %c0_5 = arith.constant 0 : index
      %20 = vector.load %arg5[%c0_4, %c0_5] : memref<256x128xf32, #tpu.memory_space<vmem>>, vector<256x128xf32>
      %cst = arith.constant 0.000000e+00 : f32
      %21 = vector.broadcast %cst : f32 to vector<256x128xf32>
      %22 = arith.maximumf %20, %21 : vector<256x128xf32>
      %c0_6 = arith.constant 0 : index
      %c0_7 = arith.constant 0 : index
      %23 = vector.load %arg17[%c0_6, %c0_7] : memref<256x128xf32, #tpu.memory_space<vmem>>, vector<256x128xf32>
      %cst_8 = arith.constant dense<0.000000e+00> : vector<256x128xf32>
      %24 = tpu.matmul %19, %22, %cst_8 {dimension_numbers = #tpu.dot_dimension_numbers<[1], [0], [0], [1], [0, 0, 1, 1], [], []>} : vector<256x256xf32>, vector<256x128xf32>, vector<256x128xf32> -> vector<256x128xf32>
      %25 = arith.addf %23, %24 : vector<256x128xf32>
      %c0_9 = arith.constant 0 : index
      %c0_10 = arith.constant 0 : index
      %26 = vector.load %arg17[%c0_9, %c0_10] : memref<256x128xf32, #tpu.memory_space<vmem>>, vector<256x128xf32>
      tpu.vector_store %arg17[%c0_9, %c0_10], %25 {strides = array<i32>} : memref<256x128xf32, #tpu.memory_space<vmem>>, vector<256x128xf32>,
    } else {
    }
    %c1_i32 = arith.constant 1 : i32
    %8 = arith.cmpi eq, %arg1, %c1_i32 : i32
    %9 = arith.extui %8 : i1 to i32
    %c0_i32_2 = arith.constant 0 : i32
    %10 = arith.cmpi ne, %9, %c0_i32_2 : i32
    scf.if %10 {
      %c0 = arith.constant 0 : index
      %11 = memref.load %arg15[%c0] : memref<1xf32, #tpu.memory_space<smem>>
      %cst = arith.constant 1.000000e+00 : f32
      %12 = arith.addf %cst, %11 : f32
      %c0_3 = arith.constant 0 : index
      %c0_4 = arith.constant 0 : index
      %13 = vector.load %arg6[%c0_3, %c0_4] : memref<256x128xf32, #tpu.memory_space<vmem>>, vector<256x128xf32>
      %14 = vector.broadcast %12 : f32 to vector<256x128xf32>
      %15 = arith.mulf %14, %13 : vector<256x128xf32>
      %c0_5 = arith.constant 0 : index
      %c0_6 = arith.constant 0 : index
      %16 = vector.load %arg17[%c0_5, %c0_6] : memref<256x128xf32, #tpu.memory_space<vmem>>, vector<256x128xf32>
      %17 = arith.addf %15, %16 : vector<256x128xf32>
      %c0_7 = arith.constant 0 : index
      %c0_8 = arith.constant 0 : index
      %18 = vector.load %arg7[%c0_7, %c0_8] : memref<128x128xf32, #tpu.memory_space<vmem>>, vector<128x128xf32>
      %cst_9 = arith.constant dense<0.000000e+00> : vector<256x128xf32>
      %19 = tpu.matmul %17, %18, %cst_9 {dimension_numbers = #tpu.dot_dimension_numbers<[1], [0], [0], [1], [0, 0, 1, 1], [], []>} : vector<256x128xf32>, vector<128x128xf32>, vector<256x128xf32> -> vector<256x128xf32>
      %c0_10 = arith.constant 0 : index
      %c0_11 = arith.constant 0 : index
      %20 = vector.load %arg8[%c0_10, %c0_11] : memref<1x128xf32, #tpu.memory_space<vmem>>, vector<1x128xf32>
      %21 = vector.broadcast %20 : vector<1x128xf32> to vector<256x128xf32>
      %22 = arith.addf %19, %21 : vector<256x128xf32>
      %c0_12 = arith.constant 0 : index
      %c0_13 = arith.constant 0 : index
      %23 = vector.load %arg9[%c0_12, %c0_13] : memref<1x128xf32, #tpu.memory_space<vmem>>, vector<1x128xf32>
      %24 = vector.broadcast %23 : vector<1x128xf32> to vector<256x128xf32>
      %25 = arith.mulf %22, %24 : vector<256x128xf32>
      %c0_14 = arith.constant 0 : index
      %c0_15 = arith.constant 0 : index
      %26 = vector.load %arg10[%c0_14, %c0_15] : memref<1x128xf32, #tpu.memory_space<vmem>>, vector<1x128xf32>
      %27 = vector.broadcast %26 : vector<1x128xf32> to vector<256x128xf32>
      %28 = arith.addf %25, %27 : vector<256x128xf32>
      %cst_16 = arith.constant 0.000000e+00 : f32
      %29 = vector.broadcast %cst_16 : f32 to vector<256x128xf32>
      %30 = arith.maximumf %28, %29 : vector<256x128xf32>
      %c0_17 = arith.constant 0 : index
      %c0_18 = arith.constant 0 : index
      %31 = vector.load %arg11[%c0_17, %c0_18] : memref<128x128xf32, #tpu.memory_space<vmem>>, vector<128x128xf32>
      %cst_19 = arith.constant dense<0.000000e+00> : vector<256x128xf32>
      %32 = tpu.matmul %30, %31, %cst_19 {dimension_numbers = #tpu.dot_dimension_numbers<[1], [0], [0], [1], [0, 0, 1, 1], [], []>} : vector<256x128xf32>, vector<128x128xf32>, vector<256x128xf32> -> vector<256x128xf32>
      %c0_20 = arith.constant 0 : index
      %c0_21 = arith.constant 0 : index
      %33 = vector.load %arg12[%c0_20, %c0_21] : memref<1x128xf32, #tpu.memory_space<vmem>>, vector<1x128xf32>
      %34 = vector.broadcast %33 : vector<1x128xf32> to vector<256x128xf32>
      %35 = arith.addf %32, %34 : vector<256x128xf32>
      %c0_22 = arith.constant 0 : index
      %c0_23 = arith.constant 0 : index
      %36 = vector.load %arg13[%c0_22, %c0_23] : memref<1x128xf32, #tpu.memory_space<vmem>>, vector<1x128xf32>
      %37 = vector.broadcast %36 : vector<1x128xf32> to vector<256x128xf32>
      %38 = arith.mulf %35, %37 : vector<256x128xf32>
      %c0_24 = arith.constant 0 : index
      %c0_25 = arith.constant 0 : index
      %39 = vector.load %arg14[%c0_24, %c0_25] : memref<1x128xf32, #tpu.memory_space<vmem>>, vector<1x128xf32>
      %40 = vector.broadcast %39 : vector<1x128xf32> to vector<256x128xf32>
      %41 = arith.addf %38, %40 : vector<256x128xf32>
      %cst_26 = arith.constant 0.000000e+00 : f32
      %42 = vector.broadcast %cst_26 : f32 to vector<256x128xf32>
      %43 = arith.maximumf %41, %42 : vector<256x128xf32>
      %c0_27 = arith.constant 0 : index
      %c0_28 = arith.constant 0 : index
      %44 = vector.load %arg16[%c0_27, %c0_28] : memref<256x128xf32, #tpu.memory_space<vmem>>, vector<256x128xf32>
      tpu.vector_store %arg16[%c0_27, %c0_28], %43 {strides = array<i32>} : memref<256x128xf32, #tpu.memory_space<vmem>>, vector<256x128xf32>,
    } else {
    }
    return
  }
  func.func @transform_0(%arg0: i32, %arg1: i32, %arg2: memref<2xi32, #tpu.memory_space<smem>>, %arg3: memref<2xi32, #tpu.memory_space<smem>>) -> (i32, i32) {
    %0 = arith.index_cast %arg0 : i32 to index
    %1 = memref.load %arg3[%0] : memref<2xi32, #tpu.memory_space<smem>>
    %c1_i32 = arith.constant 1 : i32
    %2 = arith.subi %1, %c1_i32 : i32
    %c0_i32 = arith.constant 0 : i32
    %3 = arith.maxsi %2, %c0_i32 : i32
    %4 = arith.minsi %arg1, %3 : i32
    %5 = arith.index_cast %arg0 : i32 to index
    %6 = memref.load %arg2[%5] : memref<2xi32, #tpu.memory_space<smem>>
    %7 = arith.addi %6, %4 : i32
    %c0_i32_0 = arith.constant 0 : i32
    %c0_i32_1 = arith.constant 0 : i32
    return %c0_i32_0, %7 : i32, i32
  }
  func.func @transform_1(%arg0: i32, %arg1: i32, %arg2: memref<2xi32, #tpu.memory_space<smem>>, %arg3: memref<2xi32, #tpu.memory_space<smem>>) -> (i32, i32) {
    %0 = arith.index_cast %arg0 : i32 to index
    %1 = memref.load %arg3[%0] : memref<2xi32, #tpu.memory_space<smem>>
    %c1_i32 = arith.constant 1 : i32
    %2 = arith.subi %1, %c1_i32 : i32
    %c0_i32 = arith.constant 0 : i32
    %3 = arith.maxsi %2, %c0_i32 : i32
    %4 = arith.minsi %arg1, %3 : i32
    %5 = arith.index_cast %arg0 : i32 to index
    %6 = memref.load %arg2[%5] : memref<2xi32, #tpu.memory_space<smem>>
    %7 = arith.addi %6, %4 : i32
    %c0_i32_0 = arith.constant 0 : i32
    %c0_i32_1 = arith.constant 0 : i32
    return %7, %c0_i32_0 : i32, i32
  }
  func.func @transform_2(%arg0: i32, %arg1: i32, %arg2: memref<2xi32, #tpu.memory_space<smem>>, %arg3: memref<2xi32, #tpu.memory_space<smem>>) -> (i32, i32) {
    %c0_i32 = arith.constant 0 : i32
    %c0_i32_0 = arith.constant 0 : i32
    return %arg0, %c0_i32 : i32, i32
  }
  func.func @transform_3(%arg0: i32, %arg1: i32, %arg2: memref<2xi32, #tpu.memory_space<smem>>, %arg3: memref<2xi32, #tpu.memory_space<smem>>) -> (i32, i32) {
    %c0_i32 = arith.constant 0 : i32
    %c0_i32_0 = arith.constant 0 : i32
    %c0_i32_1 = arith.constant 0 : i32
    return %c0_i32, %c0_i32_0 : i32, i32
  }
  func.func @transform_4(%arg0: i32, %arg1: i32, %arg2: memref<2xi32, #tpu.memory_space<smem>>, %arg3: memref<2xi32, #tpu.memory_space<smem>>) -> (i32, i32) {
    %c0_i32 = arith.constant 0 : i32
    %c0_i32_0 = arith.constant 0 : i32
    %c0_i32_1 = arith.constant 0 : i32
    return %c0_i32, %c0_i32_0 : i32, i32
  }
  func.func @transform_5(%arg0: i32, %arg1: i32, %arg2: memref<2xi32, #tpu.memory_space<smem>>, %arg3: memref<2xi32, #tpu.memory_space<smem>>) -> (i32, i32) {
    %c0_i32 = arith.constant 0 : i32
    %c0_i32_0 = arith.constant 0 : i32
    %c0_i32_1 = arith.constant 0 : i32
    return %c0_i32, %c0_i32_0 : i32, i32
  }
  func.func @transform_6(%arg0: i32, %arg1: i32, %arg2: memref<2xi32, #tpu.memory_space<smem>>, %arg3: memref<2xi32, #tpu.memory_space<smem>>) -> (i32, i32) {
    %c0_i32 = arith.constant 0 : i32
    %c0_i32_0 = arith.constant 0 : i32
    %c0_i32_1 = arith.constant 0 : i32
    return %c0_i32, %c0_i32_0 : i32, i32
  }
  func.func @transform_7(%arg0: i32, %arg1: i32, %arg2: memref<2xi32, #tpu.memory_space<smem>>, %arg3: memref<2xi32, #tpu.memory_space<smem>>) -> (i32, i32) {
    %c0_i32 = arith.constant 0 : i32
    %c0_i32_0 = arith.constant 0 : i32
    %c0_i32_1 = arith.constant 0 : i32
    return %c0_i32, %c0_i32_0 : i32, i32
  }
  func.func @transform_8(%arg0: i32, %arg1: i32, %arg2: memref<2xi32, #tpu.memory_space<smem>>, %arg3: memref<2xi32, #tpu.memory_space<smem>>) -> (i32, i32) {
    %c0_i32 = arith.constant 0 : i32
    %c0_i32_0 = arith.constant 0 : i32
    %c0_i32_1 = arith.constant 0 : i32
    return %c0_i32, %c0_i32_0 : i32, i32
  }
  func.func @transform_9(%arg0: i32, %arg1: i32, %arg2: memref<2xi32, #tpu.memory_space<smem>>, %arg3: memref<2xi32, #tpu.memory_space<smem>>) -> (i32, i32) {
    %c0_i32 = arith.constant 0 : i32
    %c0_i32_0 = arith.constant 0 : i32
    %c0_i32_1 = arith.constant 0 : i32
    return %c0_i32, %c0_i32_0 : i32, i32
  }
  func.func @transform_10(%arg0: i32, %arg1: i32, %arg2: memref<2xi32, #tpu.memory_space<smem>>, %arg3: memref<2xi32, #tpu.memory_space<smem>>) -> (i32, i32) {
    %c0_i32 = arith.constant 0 : i32
    %c0_i32_0 = arith.constant 0 : i32
    %c0_i32_1 = arith.constant 0 : i32
    return %c0_i32, %c0_i32_0 : i32, i32
  }
  func.func @transform_11(%arg0: i32, %arg1: i32, %arg2: memref<2xi32, #tpu.memory_space<smem>>, %arg3: memref<2xi32, #tpu.memory_space<smem>>) -> i32 {
    %c0_i32 = arith.constant 0 : i32
    %c0_i32_0 = arith.constant 0 : i32
    return %c0_i32 : i32
  }
  func.func @transform_12(%arg0: i32, %arg1: i32, %arg2: memref<2xi32, #tpu.memory_space<smem>>, %arg3: memref<2xi32, #tpu.memory_space<smem>>) -> (i32, i32) {
    %c0_i32 = arith.constant 0 : i32
    %c0_i32_0 = arith.constant 0 : i32
    return %arg0, %c0_i32 : i32, i32
  }
}

</mosaic_0001>

<llo_original>
// kernel: tpu_custom_call.1
$region0: #{tpu_custom_call.1}
  #allocation0 [shape = 'u32[]', space=smem, size = 0x4, offset = 0x4, fixed_abs, tag = 'smem constant byte address 0x4 - core index']
  #allocation1 [shape = 'u32[144,128]{1,0:T(1,128)}', space=vmem, size = 0x12000, scoped, tag = 'internal scratch']
  #allocation2 [shape = 'f32[256,128]{1,0:T(8,128)}', space=vmem, size = 0x20000, scoped, tag = 'scratch operand']
  #allocation3 [shape = 's32[1]{0}', space=sflag, size = 0x4, scoped, tag = 'scoped memory for tpu_custom_call.1']
  #allocation4 [shape = 'u8[512]{0}', space=smem, size = 0x200, scoped, tag = 'prefetched SMEM operand 0']
  #allocation5 [shape = 'u8[512]{0}', space=smem, size = 0x200, scoped, tag = 'prefetched SMEM operand 1']
  #allocation6 [shape = 'f32[1]{0:T(128)S(6)}', space=smem, size = 0x200, scoped, tag = 'scoped memory for tpu_custom_call.1']
  %s0 = inlined_call_operand.vmem [shape: s32[2], index: 0, kind: input, shape index: {}]
  %s1 = inlined_call_operand.vmem [shape: s32[2], index: 1, kind: input, shape index: {}]
  %s2 = inlined_call_operand.vmem [shape: s32[1,768], index: 2, kind: input, shape index: {}]
  %s3 = inlined_call_operand.hbm [shape: f32[768,128], index: 3, kind: input, shape index: {}]
  %s4 = inlined_call_operand.hbm [shape: f32[512,128], index: 4, kind: input, shape index: {}]
  %s5 = inlined_call_operand.hbm [shape: f32[128,128], index: 5, kind: input, shape index: {}]
  %s6 = inlined_call_operand.vmem [shape: f32[1,128], index: 6, kind: input, shape index: {}]
  %s7 = inlined_call_operand.vmem [shape: f32[1,128], index: 7, kind: input, shape index: {}]
  %s8 = inlined_call_operand.vmem [shape: f32[1,128], index: 8, kind: input, shape index: {}]
  %s9 = inlined_call_operand.hbm [shape: f32[128,128], index: 9, kind: input, shape index: {}]
  %s10 = inlined_call_operand.vmem [shape: f32[1,128], index: 10, kind: input, shape index: {}]
  %s11 = inlined_call_operand.vmem [shape: f32[1,128], index: 11, kind: input, shape index: {}]
  %s12 = inlined_call_operand.vmem [shape: f32[1,128], index: 12, kind: input, shape index: {}]
  %s13 = inlined_call_operand.<no memory space> [shape: f32[1], index: 13, kind: input, shape index: {}]
  %s14 = inlined_call_operand.hbm [shape: f32[512,128], index: 14, kind: output, shape index: {}]
  %s15 = sld [smem:[#allocation0]]
  $region109: #{tpu_custom_call.1} parent=0
    _
  %s17 = ssub.s32 1, %s15
  %s18 = scalar_select 0, %s17, %s15
  %s19 = sshll.u32 %s0, 4
  %s20 = int_to_ptr.vmem [resolvable:$true] %s19
  %22 = dma.vmem_to_smem %s20, 16, [#allocation4], [#allocation3]
  %s23 = sshll.u32 %s1, 4
  %s24 = int_to_ptr.vmem [resolvable:$true] %s23
  %26 = dma.vmem_to_smem %s24, 16, [#allocation5], [#allocation3]
  %27 = sst [smem:[#allocation6]] %s13
  %28 = dma.done [#allocation3], 32
  %29 = sfence
  $region1: #{tpu_custom_call.1} parent=0
    #allocation7 [shape = 'u8[262144]{0}', space=vmem, size = 0x40000, scoped, tag = 'input window, operand 3']
    #allocation8 [shape = 's32[2]{0}', space=sflag, size = 0x8, scoped, tag = 'scoped memory for tpu_custom_call.1']
    #allocation9 [shape = 's32[2]{0}', space=sflag, size = 0x8, scoped, tag = 'scoped memory for tpu_custom_call.1']
    #allocation10 [shape = 'u8[262144]{0}', space=vmem, size = 0x40000, scoped, tag = 'input window, operand 4']
    #allocation11 [shape = 's32[2]{0}', space=sflag, size = 0x8, scoped, tag = 'scoped memory for tpu_custom_call.1']
    #allocation12 [shape = 'u8[65536]{0}', space=vmem, size = 0x10000, scoped, tag = 'input window, operand 5, single buffered']
    #allocation13 [shape = 'u8[65536]{0}', space=vmem, size = 0x10000, scoped, tag = 'input window, operand 9, single buffered']
    #allocation14 [shape = 's32[1]{0}', space=sflag, size = 0x4, scoped, tag = 'scoped memory for tpu_custom_call.1']
    #allocation15 [shape = 'u8[262144]{0}', space=vmem, size = 0x40000, scoped, tag = 'output window, operand 0']
    %30 = vsyncpa [#allocation8], 0
    %s31 = scalar_lea.sflag [#allocation8], 1
    %32 = vsyncpa %s31, 0
    %33 = vsyncpa [#allocation11], 0
    %s34 = scalar_lea.sflag [#allocation11], 1
    %35 = vsyncpa %s34, 0
    %36 = vsyncpa [#allocation14], 0
    %37 = vsyncpa [#allocation9], 0
    %s38 = scalar_lea.sflag [#allocation9], 1
    %39 = vsyncpa %s38, 0
    loop: start=0, step=1, limit=6
    $region2: #{tpu_custom_call.1} parent=1 // loop_pre_header
      _
    $region3: #{tpu_custom_call.1} parent=1 // loop_header
      %s41 = sphi 0, %s45
      %p42 = scmp.ge.s32.totalorder %s41, 6
      %s48 = sphi 0, %s60
      %s49 = sphi 0, %s56
      %s50 = sphi 0, %s48
      %s51 = sphi 0, %s49
      %s52 = sphi 0, %s50
      %s53 = sphi 0, %s51
      %s79 = sphi 0, %s81
      %s82 = sphi 0, %s79
      %s83 = sphi 0, %s82
      %s99 = sphi 0, %s83
      %s121 = sphi 0, %s123
      %s124 = sphi 0, %s121
      %s125 = sphi 0, %s124
      %s141 = sphi 0, %s125
      %s147 = sphi 0, %s149
      %s150 = sphi 0, %s147
      %s151 = sphi 0, %s150
      %s167 = sphi 0, %s151
      %s171 = sphi 0, %s171
      %s173 = sphi 0, %s171
      %s174 = sphi 0, %s173
      %s188 = sphi 0, %s174
      %s192 = sphi 0, %s192
      %s194 = sphi 0, %s192
      %s195 = sphi 0, %s194
      %s209 = sphi 0, %s195
      %s213 = sphi 0, %s213
      %s215 = sphi 0, %s213
      %s216 = sphi 0, %s215
      %s230 = sphi 0, %s216
      %s234 = sphi 0, %s234
      %s236 = sphi 0, %s234
      %s237 = sphi 0, %s236
      %s251 = sphi 0, %s237
      %s255 = sphi 0, %s255
      %s257 = sphi 0, %s255
      %s258 = sphi 0, %s257
      %s272 = sphi 0, %s258
      %s276 = sphi 0, %s276
      %s278 = sphi 0, %s276
      %s279 = sphi 0, %s278
      %s293 = sphi 0, %s279
      %s297 = sphi 0, %s297
      %s299 = sphi 0, %s297
      %s300 = sphi 0, %s299
      %s314 = sphi 0, %s300
      %s318 = sphi 0, %s318
      %s320 = sphi 0, %s318
      %s321 = sphi 0, %s320
      %s335 = sphi 0, %s321
      %s339 = sphi 0, %s339
      %s341 = sphi 0, %s339
      %s342 = sphi 0, %s341
      %s356 = sphi 0, %s342
      %s362 = sphi 0, %s364
      %s365 = sphi 0, %s362
      %s366 = sphi 0, %s365
      %s382 = sphi 0, %s366
    $region4: #{tpu_custom_call.1} parent=1 // loop_header_branch
      %44 = sbr.rel (%p42) target = $region8
    $region5: #{tpu_custom_call.1} parent=1 // loop_body
      %s46 = ssub.s32 %s41, 1
      %s47 = ssub.s32 %s41, 2
      %s54 = sadd.s32 1, %s49
      %p55 = scmp.ge.s32.totalorder %s54, 2
      %s56 = scalar_select %p55, 0, %s54
      %s57 = sadd.s32 1, %s48
      %s58 = scalar_select %p55, %s57, %s48
      %p59 = scmp.ge.s32.totalorder %s58, 2
      %s60 = scalar_select %p59, 0, %s58
      %s61 = sld [smem:[#allocation5 + %s48]]
      %s62 = ssub.s32 %s61, 1
      %p63 = scmp.gt.s32.totalorder %s62, 0
      %s64 = scalar_select %p63, %s62, 0
      %p65 = scmp.lt.s32.totalorder %s49, %s64
      %s66 = scalar_select %p65, %s49, %s64
      %s67 = sld [smem:[#allocation4 + %s48]]
      %s68 = sadd.s32 %s67, %s66
      %s69 = sld [smem:[#allocation5 + %s60]]
      %s70 = ssub.s32 %s69, 1
      %p71 = scmp.gt.s32.totalorder %s70, 0
      %s72 = scalar_select %p71, %s70, 0
      %p73 = scmp.lt.s32.totalorder %s56, %s72
      %s74 = scalar_select %p73, %s56, %s72
      %s75 = sld [smem:[#allocation4 + %s60]]
      %s76 = sadd.s32 %s75, %s74
      %s77 = ssub.s32 %s68, %s76
      %p78 = scmp.eq.s32.totalorder %s77, 0
      %s80 = sadd.s32 %s79, 1
      %s81 = scalar_select %p78, %s79, %s80
      %p84 = pneg %p78
      %p85 = scmp.eq.s32.totalorder %s41, 3
      %p86 = por %p84, %p85
      %p87 = scmp.ne.s32.totalorder %s79, %s82
      %p88 = scmp.eq.s32.totalorder %s41, 0
      %p89 = por %p87, %p88
      %p90 = scmp.ne.s32.totalorder %s79, %s82
      %p91 = scmp.eq.s32.totalorder %s46, 3
      %p92 = por %p90, %p91
      %p93 = scmp.ne.s32.totalorder %s82, %s83
      %p94 = scmp.eq.s32.totalorder %s46, 0
      %p95 = por %p93, %p94
      %p96 = scmp.ne.s32.totalorder %s82, %s83
      %p97 = scmp.eq.s32.totalorder %s47, 3
      %p98 = por %p96, %p97
      %p100 = scmp.ne.s32.totalorder %s83, %s99
      %p101 = scmp.eq.s32.totalorder %s47, 0
      %p102 = por %p100, %p101
      %s103 = sld [smem:[#allocation5 + %s48]]
      %s104 = ssub.s32 %s103, 1
      %p105 = scmp.gt.s32.totalorder %s104, 0
      %s106 = scalar_select %p105, %s104, 0
      %p107 = scmp.lt.s32.totalorder %s49, %s106
      %s108 = scalar_select %p107, %s49, %s106
      %s109 = sld [smem:[#allocation4 + %s48]]
      %s110 = sadd.s32 %s109, %s108
      %s111 = sld [smem:[#allocation5 + %s60]]
      %s112 = ssub.s32 %s111, 1
      %p113 = scmp.gt.s32.totalorder %s112, 0
      %s114 = scalar_select %p113, %s112, 0
      %p115 = scmp.lt.s32.totalorder %s56, %s114
      %s116 = scalar_select %p115, %s56, %s114
      %s117 = sld [smem:[#allocation4 + %s60]]
      %s118 = sadd.s32 %s117, %s116
      %s119 = ssub.s32 %s110, %s118
      %p120 = scmp.eq.s32.totalorder %s119, 0
      %s122 = sadd.s32 %s121, 1
      %s123 = scalar_select %p120, %s121, %s122
      %p126 = pneg %p120
      %p127 = scmp.eq.s32.totalorder %s41, 3
      %p128 = por %p126, %p127
      %p129 = scmp.ne.s32.totalorder %s121, %s124
      %p130 = scmp.eq.s32.totalorder %s41, 0
      %p131 = por %p129, %p130
      %p132 = scmp.ne.s32.totalorder %s121, %s124
      %p133 = scmp.eq.s32.totalorder %s46, 3
      %p134 = por %p132, %p133
      %p135 = scmp.ne.s32.totalorder %s124, %s125
      %p136 = scmp.eq.s32.totalorder %s46, 0
      %p137 = por %p135, %p136
      %p138 = scmp.ne.s32.totalorder %s124, %s125
      %p139 = scmp.eq.s32.totalorder %s47, 3
      %p140 = por %p138, %p139
      %p142 = scmp.ne.s32.totalorder %s125, %s141
      %p143 = scmp.eq.s32.totalorder %s47, 0
      %p144 = por %p142, %p143
      %s145 = ssub.s32 %s48, %s60
      %p146 = scmp.eq.s32.totalorder %s145, 0
      %s148 = sadd.s32 %s147, 1
      %s149 = scalar_select %p146, %s147, %s148
      %p152 = pneg %p146
      %p153 = scmp.eq.s32.totalorder %s41, 3
      %p154 = por %p152, %p153
      %p155 = scmp.ne.s32.totalorder %s147, %s150
      %p156 = scmp.eq.s32.totalorder %s41, 0
      %p157 = por %p155, %p156
      %p158 = scmp.ne.s32.totalorder %s147, %s150
      %p159 = scmp.eq.s32.totalorder %s46, 3
      %p160 = por %p158, %p159
      %p161 = scmp.ne.s32.totalorder %s150, %s151
      %p162 = scmp.eq.s32.totalorder %s46, 0
      %p163 = por %p161, %p162
      %p164 = scmp.ne.s32.totalorder %s150, %s151
      %p165 = scmp.eq.s32.totalorder %s47, 3
      %p166 = por %p164, %p165
      %p168 = scmp.ne.s32.totalorder %s151, %s167
      %p169 = scmp.eq.s32.totalorder %s47, 0
      %p170 = por %p168, %p169
      %s172 = sadd.s32 %s171, 1
      %p175 = scmp.eq.s32.totalorder %s41, 3
      %p176 = scmp.ne.s32.totalorder %s171, %s173
      %p177 = scmp.eq.s32.totalorder %s41, 0
      %p178 = por %p176, %p177
      %p179 = scmp.ne.s32.totalorder %s171, %s173
      %p180 = scmp.eq.s32.totalorder %s46, 3
      %p181 = por %p179, %p180
      %p182 = scmp.ne.s32.totalorder %s173, %s174
      %p183 = scmp.eq.s32.totalorder %s46, 0
      %p184 = por %p182, %p183
      %p185 = scmp.ne.s32.totalorder %s173, %s174
      %p186 = scmp.eq.s32.totalorder %s47, 3
      %p187 = por %p185, %p186
      %p189 = scmp.ne.s32.totalorder %s174, %s188
      %p190 = scmp.eq.s32.totalorder %s47, 0
      %p191 = por %p189, %p190
      %s193 = sadd.s32 %s192, 1
      %p196 = scmp.eq.s32.totalorder %s41, 3
      %p197 = scmp.ne.s32.totalorder %s192, %s194
      %p198 = scmp.eq.s32.totalorder %s41, 0
      %p199 = por %p197, %p198
      %p200 = scmp.ne.s32.totalorder %s192, %s194
      %p201 = scmp.eq.s32.totalorder %s46, 3
      %p202 = por %p200, %p201
      %p203 = scmp.ne.s32.totalorder %s194, %s195
      %p204 = scmp.eq.s32.totalorder %s46, 0
      %p205 = por %p203, %p204
      %p206 = scmp.ne.s32.totalorder %s194, %s195
      %p207 = scmp.eq.s32.totalorder %s47, 3
      %p208 = por %p206, %p207
      %p210 = scmp.ne.s32.totalorder %s195, %s209
      %p211 = scmp.eq.s32.totalorder %s47, 0
      %p212 = por %p210, %p211
      %s214 = sadd.s32 %s213, 1
      %p217 = scmp.eq.s32.totalorder %s41, 3
      %p218 = scmp.ne.s32.totalorder %s213, %s215
      %p219 = scmp.eq.s32.totalorder %s41, 0
      %p220 = por %p218, %p219
      %p221 = scmp.ne.s32.totalorder %s213, %s215
      %p222 = scmp.eq.s32.totalorder %s46, 3
      %p223 = por %p221, %p222
      %p224 = scmp.ne.s32.totalorder %s215, %s216
      %p225 = scmp.eq.s32.totalorder %s46, 0
      %p226 = por %p224, %p225
      %p227 = scmp.ne.s32.totalorder %s215, %s216
      %p228 = scmp.eq.s32.totalorder %s47, 3
      %p229 = por %p227, %p228
      %p231 = scmp.ne.s32.totalorder %s216, %s230
      %p232 = scmp.eq.s32.totalorder %s47, 0
      %p233 = por %p231, %p232
      %s235 = sadd.s32 %s234, 1
      %p238 = scmp.eq.s32.totalorder %s41, 3
      %p239 = scmp.ne.s32.totalorder %s234, %s236
      %p240 = scmp.eq.s32.totalorder %s41, 0
      %p241 = por %p239, %p240
      %p242 = scmp.ne.s32.totalorder %s234, %s236
      %p243 = scmp.eq.s32.totalorder %s46, 3
      %p244 = por %p242, %p243
      %p245 = scmp.ne.s32.totalorder %s236, %s237
      %p246 = scmp.eq.s32.totalorder %s46, 0
      %p247 = por %p245, %p246
      %p248 = scmp.ne.s32.totalorder %s236, %s237
      %p249 = scmp.eq.s32.totalorder %s47, 3
      %p250 = por %p248, %p249
      %p252 = scmp.ne.s32.totalorder %s237, %s251
      %p253 = scmp.eq.s32.totalorder %s47, 0
      %p254 = por %p252, %p253
      %s256 = sadd.s32 %s255, 1
      %p259 = scmp.eq.s32.totalorder %s41, 3
      %p260 = scmp.ne.s32.totalorder %s255, %s257
      %p261 = scmp.eq.s32.totalorder %s41, 0
      %p262 = por %p260, %p261
      %p263 = scmp.ne.s32.totalorder %s255, %s257
      %p264 = scmp.eq.s32.totalorder %s46, 3
      %p265 = por %p263, %p264
      %p266 = scmp.ne.s32.totalorder %s257, %s258
      %p267 = scmp.eq.s32.totalorder %s46, 0
      %p268 = por %p266, %p267
      %p269 = scmp.ne.s32.totalorder %s257, %s258
      %p270 = scmp.eq.s32.totalorder %s47, 3
      %p271 = por %p269, %p270
      %p273 = scmp.ne.s32.totalorder %s258, %s272
      %p274 = scmp.eq.s32.totalorder %s47, 0
      %p275 = por %p273, %p274
      %s277 = sadd.s32 %s276, 1
      %p280 = scmp.eq.s32.totalorder %s41, 3
      %p281 = scmp.ne.s32.totalorder %s276, %s278
      %p282 = scmp.eq.s32.totalorder %s41, 0
      %p283 = por %p281, %p282
      %p284 = scmp.ne.s32.totalorder %s276, %s278
      %p285 = scmp.eq.s32.totalorder %s46, 3
      %p286 = por %p284, %p285
      %p287 = scmp.ne.s32.totalorder %s278, %s279
      %p288 = scmp.eq.s32.totalorder %s46, 0
      %p289 = por %p287, %p288
      %p290 = scmp.ne.s32.totalorder %s278, %s279
      %p291 = scmp.eq.s32.totalorder %s47, 3
      %p292 = por %p290, %p291
      %p294 = scmp.ne.s32.totalorder %s279, %s293
      %p295 = scmp.eq.s32.totalorder %s47, 0
      %p296 = por %p294, %p295
      %s298 = sadd.s32 %s297, 1
      %p301 = scmp.eq.s32.totalorder %s41, 3
      %p302 = scmp.ne.s32.totalorder %s297, %s299
      %p303 = scmp.eq.s32.totalorder %s41, 0
      %p304 = por %p302, %p303
      %p305 = scmp.ne.s32.totalorder %s297, %s299
      %p306 = scmp.eq.s32.totalorder %s46, 3
      %p307 = por %p305, %p306
      %p308 = scmp.ne.s32.totalorder %s299, %s300
      %p309 = scmp.eq.s32.totalorder %s46, 0
      %p310 = por %p308, %p309
      %p311 = scmp.ne.s32.totalorder %s299, %s300
      %p312 = scmp.eq.s32.totalorder %s47, 3
      %p313 = por %p311, %p312
      %p315 = scmp.ne.s32.totalorder %s300, %s314
      %p316 = scmp.eq.s32.totalorder %s47, 0
      %p317 = por %p315, %p316
      %s319 = sadd.s32 %s318, 1
      %p322 = scmp.eq.s32.totalorder %s41, 3
      %p323 = scmp.ne.s32.totalorder %s318, %s320
      %p324 = scmp.eq.s32.totalorder %s41, 0
      %p325 = por %p323, %p324
      %p326 = scmp.ne.s32.totalorder %s318, %s320
      %p327 = scmp.eq.s32.totalorder %s46, 3
      %p328 = por %p326, %p327
      %p329 = scmp.ne.s32.totalorder %s320, %s321
      %p330 = scmp.eq.s32.totalorder %s46, 0
      %p331 = por %p329, %p330
      %p332 = scmp.ne.s32.totalorder %s320, %s321
      %p333 = scmp.eq.s32.totalorder %s47, 3
      %p334 = por %p332, %p333
      %p336 = scmp.ne.s32.totalorder %s321, %s335
      %p337 = scmp.eq.s32.totalorder %s47, 0
      %p338 = por %p336, %p337
      %s340 = sadd.s32 %s339, 1
      %p343 = scmp.eq.s32.totalorder %s41, 3
      %p344 = scmp.ne.s32.totalorder %s339, %s341
      %p345 = scmp.eq.s32.totalorder %s41, 0
      %p346 = por %p344, %p345
      %p347 = scmp.ne.s32.totalorder %s339, %s341
      %p348 = scmp.eq.s32.totalorder %s46, 3
      %p349 = por %p347, %p348
      %p350 = scmp.ne.s32.totalorder %s341, %s342
      %p351 = scmp.eq.s32.totalorder %s46, 0
      %p352 = por %p350, %p351
      %p353 = scmp.ne.s32.totalorder %s341, %s342
      %p354 = scmp.eq.s32.totalorder %s47, 3
      %p355 = por %p353, %p354
      %p357 = scmp.ne.s32.totalorder %s342, %s356
      %p358 = scmp.eq.s32.totalorder %s47, 0
      %p359 = por %p357, %p358
      %s360 = ssub.s32 %s48, %s60
      %p361 = scmp.eq.s32.totalorder %s360, 0
      %s363 = sadd.s32 %s362, 1
      %s364 = scalar_select %p361, %s362, %s363
      %p367 = pneg %p361
      %p368 = scmp.eq.s32.totalorder %s41, 3
      %p369 = por %p367, %p368
      %p370 = scmp.ne.s32.totalorder %s362, %s365
      %p371 = scmp.eq.s32.totalorder %s41, 0
      %p372 = por %p370, %p371
      %p373 = scmp.ne.s32.totalorder %s362, %s365
      %p374 = scmp.eq.s32.totalorder %s46, 3
      %p375 = por %p373, %p374
      %p376 = scmp.ne.s32.totalorder %s365, %s366
      %p377 = scmp.eq.s32.totalorder %s46, 0
      %p378 = por %p376, %p377
      %p379 = scmp.ne.s32.totalorder %s365, %s366
      %p380 = scmp.eq.s32.totalorder %s47, 3
      %p381 = por %p379, %p380
      %p383 = scmp.ne.s32.totalorder %s366, %s382
      %p384 = scmp.eq.s32.totalorder %s47, 0
      %p385 = por %p383, %p384
      %p386 = scmp.le.s32.totalorder 1, %s41
      %p387 = scmp.lt.s32.totalorder %s41, 5
      %p388 = pnand %p386, %p387
      %p389 = pneg %p388
      // Predicated region
      $region9: #{tpu_custom_call.1} parent=5 // pred_check
        _
      $region10: #{tpu_custom_call.1} parent=5 // pred_check_branch
        %391 = sbr.rel (%p388) target = $region12
      $region11: #{tpu_custom_call.1} parent=5 // pred_region
        %s392 = ssub.s32 %s41, 1
        // Predicated region
        $region13: #{tpu_custom_call.1} parent=11 // pred_check
          %p393 = pneg %p184
        $region14: #{tpu_custom_call.1} parent=11 // pred_check_branch
          %395 = sbr.rel (%p393) target = $region16
        $region15: #{tpu_custom_call.1} parent=11 // pred_region
          %s397 = ssub.s32 2048, 2048
          %398 = vsyncadd [#allocation11], %s397
          %s399 = sshll.u32 [#allocation12], 4
          %s400 = int_to_ptr.vmem [resolvable:$true] %s399
          %405 = dma.hbm_to_vmem [thread:$0]  %s5, 2048, %s400, [#allocation11], 128, 128, 8
        $region16: #{tpu_custom_call.1} parent=11 // pred_fallthru
          _
        // Predicated region
        $region17: #{tpu_custom_call.1} parent=11 // pred_check
          %p406 = pneg %p205
        $region18: #{tpu_custom_call.1} parent=11 // pred_check_branch
          %408 = sbr.rel (%p406) target = $region20
        $region19: #{tpu_custom_call.1} parent=11 // pred_region
          _
        $region20: #{tpu_custom_call.1} parent=11 // pred_fallthru
          _
        // Predicated region
        $region21: #{tpu_custom_call.1} parent=11 // pred_check
          %p409 = pneg %p226
        $region22: #{tpu_custom_call.1} parent=11 // pred_check_branch
          %411 = sbr.rel (%p409) target = $region24
        $region23: #{tpu_custom_call.1} parent=11 // pred_region
          _
        $region24: #{tpu_custom_call.1} parent=11 // pred_fallthru
          _
        // Predicated region
        $region25: #{tpu_custom_call.1} parent=11 // pred_check
          %p412 = pneg %p247
        $region26: #{tpu_custom_call.1} parent=11 // pred_check_branch
          %414 = sbr.rel (%p412) target = $region28
        $region27: #{tpu_custom_call.1} parent=11 // pred_region
          _
        $region28: #{tpu_custom_call.1} parent=11 // pred_fallthru
          _
        // Predicated region
        $region29: #{tpu_custom_call.1} parent=11 // pred_check
          %p415 = pneg %p268
        $region30: #{tpu_custom_call.1} parent=11 // pred_check_branch
          %417 = sbr.rel (%p415) target = $region32
        $region31: #{tpu_custom_call.1} parent=11 // pred_region
          %s419 = ssub.s32 2048, 2048
          %420 = vsyncadd [#allocation14], %s419
          %s421 = sshll.u32 [#allocation13], 4
          %s422 = int_to_ptr.vmem [resolvable:$true] %s421
          %427 = dma.hbm_to_vmem [thread:$0]  %s9, 2048, %s422, [#allocation14], 128, 128, 8
        $region32: #{tpu_custom_call.1} parent=11 // pred_fallthru
          _
        // Predicated region
        $region33: #{tpu_custom_call.1} parent=11 // pred_check
          %p428 = pneg %p289
        $region34: #{tpu_custom_call.1} parent=11 // pred_check_branch
          %430 = sbr.rel (%p428) target = $region36
        $region35: #{tpu_custom_call.1} parent=11 // pred_region
          _
        $region36: #{tpu_custom_call.1} parent=11 // pred_fallthru
          _
        // Predicated region
        $region37: #{tpu_custom_call.1} parent=11 // pred_check
          %p431 = pneg %p310
        $region38: #{tpu_custom_call.1} parent=11 // pred_check_branch
          %433 = sbr.rel (%p431) target = $region40
        $region39: #{tpu_custom_call.1} parent=11 // pred_region
          _
        $region40: #{tpu_custom_call.1} parent=11 // pred_fallthru
          _
        // Predicated region
        $region41: #{tpu_custom_call.1} parent=11 // pred_check
          %p434 = pneg %p331
        $region42: #{tpu_custom_call.1} parent=11 // pred_check_branch
          %436 = sbr.rel (%p434) target = $region44
        $region43: #{tpu_custom_call.1} parent=11 // pred_region
          _
        $region44: #{tpu_custom_call.1} parent=11 // pred_fallthru
          _
        // Predicated region
        $region45: #{tpu_custom_call.1} parent=11 // pred_check
          %p437 = pneg %p352
        $region46: #{tpu_custom_call.1} parent=11 // pred_check_branch
          %439 = sbr.rel (%p437) target = $region48
        $region47: #{tpu_custom_call.1} parent=11 // pred_region
          _
        $region48: #{tpu_custom_call.1} parent=11 // pred_fallthru
          _
      $region12: #{tpu_custom_call.1} parent=5 // pred_fallthru
        _
      %p440 = scmp.lt.s32.totalorder %s41, 4
      // Predicated region
      $region49: #{tpu_custom_call.1} parent=5 // pred_check
        %p441 = pneg %p440
      $region50: #{tpu_custom_call.1} parent=5 // pred_check_branch
        %443 = sbr.rel (%p441) target = $region52
      $region51: #{tpu_custom_call.1} parent=5 // pred_region
        // Predicated region
        $region53: #{tpu_custom_call.1} parent=51 // pred_check
          %p444 = pneg %p89
        $region54: #{tpu_custom_call.1} parent=51 // pred_check_branch
          %446 = sbr.rel (%p444) target = $region56
        $region55: #{tpu_custom_call.1} parent=51 // pred_region
          %s447 = sld [smem:[#allocation5 + %s48]]
          %s448 = ssub.s32 %s447, 1
          %p449 = scmp.gt.s32.totalorder %s448, 0
          %s450 = scalar_select %p449, %s448, 0
          %p451 = scmp.lt.s32.totalorder %s49, %s450
          %s452 = scalar_select %p451, %s49, %s450
          %s453 = sld [smem:[#allocation4 + %s48]]
          %s454 = sadd.s32 %s453, %s452
          %s455 = smul.u32 2, %s454
          %p456 = scmp.lt.s32.totalorder %s455, 5
          %s457 = scalar_select %p456, %s455, 5
          %s458 = scalar_lea.vmem %s2, %s457
          %s459 = sld [smem:[#allocation5 + %s48]]
          %s460 = ssub.s32 %s459, 1
          %p461 = scmp.gt.s32.totalorder %s460, 0
          %s462 = scalar_select %p461, %s460, 0
          %p463 = scmp.lt.s32.totalorder %s49, %s462
          %s464 = scalar_select %p463, %s49, %s462
          %s465 = sld [smem:[#allocation4 + %s48]]
          %s466 = sadd.s32 %s465, %s464
          %s467 = smul.u32 2, %s466
        $region56: #{tpu_custom_call.1} parent=51 // pred_fallthru
          _
        // Predicated region
        $region57: #{tpu_custom_call.1} parent=51 // pred_check
          %p468 = pneg %p131
        $region58: #{tpu_custom_call.1} parent=51 // pred_check_branch
          %470 = sbr.rel (%p468) target = $region60
        $region59: #{tpu_custom_call.1} parent=51 // pred_region
          %s471 = sand.u32 %s121, 1
          %s472 = scalar_lea.sflag [#allocation8], %s471
          %s473 = sand.u32 %s121, 1
          %s474 = smul.addr %s473, 256
          %s475 = scalar_lea.vmem [#allocation7], %s474
          %s476 = sld [smem:[#allocation5 + %s48]]
          %s477 = ssub.s32 %s476, 1
          %p478 = scmp.gt.s32.totalorder %s477, 0
          %s479 = scalar_select %p478, %s477, 0
          %p480 = scmp.lt.s32.totalorder %s49, %s479
          %s481 = scalar_select %p480, %s49, %s479
          %s482 = sld [smem:[#allocation4 + %s48]]
          %s483 = sadd.s32 %s482, %s481
          %s484 = smul.u32 32, %s483
          %s486 = ssub.s32 4096, 4096
          %487 = vsyncadd %s472, %s486
          %s488 = smul.addr %s484, 128
          %s489 = scalar_lea.hbm %s3, %s488
          %s490 = sshll.u32 %s475, 4
          %s491 = int_to_ptr.vmem [resolvable:$true] %s490
          %496 = dma.hbm_to_vmem [thread:$0]  %s489, 4096, %s491, %s472, 128, 128, 8
        $region60: #{tpu_custom_call.1} parent=51 // pred_fallthru
          _
        // Predicated region
        $region61: #{tpu_custom_call.1} parent=51 // pred_check
          %p497 = pneg %p157
        $region62: #{tpu_custom_call.1} parent=51 // pred_check_branch
          %499 = sbr.rel (%p497) target = $region64
        $region63: #{tpu_custom_call.1} parent=51 // pred_region
          %s500 = sand.u32 %s41, 1
          %s501 = scalar_lea.sflag [#allocation11], %s500
          %s502 = sand.u32 %s147, 1
          %s503 = smul.addr %s502, 256
          %s504 = scalar_lea.vmem [#allocation10], %s503
          %s505 = smul.u32 32, %s48
          %s507 = ssub.s32 4096, 4096
          %508 = vsyncadd %s501, %s507
          %s509 = smul.addr %s505, 128
          %s510 = scalar_lea.hbm %s4, %s509
          %s511 = sshll.u32 %s504, 4
          %s512 = int_to_ptr.vmem [resolvable:$true] %s511
          %517 = dma.hbm_to_vmem [thread:$0]  %s510, 4096, %s512, %s501, 128, 128, 8
        $region64: #{tpu_custom_call.1} parent=51 // pred_fallthru
          _
      $region52: #{tpu_custom_call.1} parent=5 // pred_fallthru
        _
      %p518 = scmp.le.s32.totalorder 1, %s41
      %p519 = scmp.lt.s32.totalorder %s41, 5
      %p520 = pnand %p518, %p519
      %p521 = pneg %p520
      // Predicated region
      $region65: #{tpu_custom_call.1} parent=5 // pred_check
        _
      $region66: #{tpu_custom_call.1} parent=5 // pred_check_branch
        %523 = sbr.rel (%p520) target = $region68
      $region67: #{tpu_custom_call.1} parent=5 // pred_region
        %s524 = ssub.s32 %s41, 1
        %s525 = sand.u32 %s124, 1
        %s526 = scalar_lea.sflag [#allocation8], %s525
        %s527 = sand.u32 %s124, 1
        %s528 = smul.addr %s527, 256
        %s529 = scalar_lea.vmem [#allocation7], %s528
        // Predicated region
        $region69: #{tpu_custom_call.1} parent=67 // pred_check
          %p530 = pneg %p137
        $region70: #{tpu_custom_call.1} parent=67 // pred_check_branch
          %532 = sbr.rel (%p530) target = $region72
        $region71: #{tpu_custom_call.1} parent=67 // pred_region
          %533 = dma.done %s526, 4096
        $region72: #{tpu_custom_call.1} parent=67 // pred_fallthru
          _
        %s534 = sand.u32 %s46, 1
        %s535 = scalar_lea.sflag [#allocation11], %s534
        %s536 = sand.u32 %s150, 1
        %s537 = smul.addr %s536, 256
        %s538 = scalar_lea.vmem [#allocation10], %s537
        // Predicated region
        $region73: #{tpu_custom_call.1} parent=67 // pred_check
          %p539 = pneg %p163
        $region74: #{tpu_custom_call.1} parent=67 // pred_check_branch
          %541 = sbr.rel (%p539) target = $region76
        $region75: #{tpu_custom_call.1} parent=67 // pred_region
          %542 = dma.done %s535, 4096
        $region76: #{tpu_custom_call.1} parent=67 // pred_fallthru
          _
        // Predicated region
        $region77: #{tpu_custom_call.1} parent=67 // pred_check
          %p543 = pneg %p184
        $region78: #{tpu_custom_call.1} parent=67 // pred_check_branch
          %545 = sbr.rel (%p543) target = $region80
        $region79: #{tpu_custom_call.1} parent=67 // pred_region
          %546 = dma.done [#allocation11], 2048
        $region80: #{tpu_custom_call.1} parent=67 // pred_fallthru
          _
        // Predicated region
        $region81: #{tpu_custom_call.1} parent=67 // pred_check
          %p547 = pneg %p268
        $region82: #{tpu_custom_call.1} parent=67 // pred_check_branch
          %549 = sbr.rel (%p547) target = $region84
        $region83: #{tpu_custom_call.1} parent=67 // pred_region
          %550 = dma.done [#allocation14], 2048
        $region84: #{tpu_custom_call.1} parent=67 // pred_fallthru
          _
        %s551 = sld [smem:[#allocation5 + %s50]]
        %s552 = ssub.s32 %s551, 1
        %p553 = scmp.gt.s32.totalorder %s552, 0
        %s554 = scalar_select %p553, %s552, 0
        %p555 = scmp.lt.s32.totalorder %s51, %s554
        %s556 = scalar_select %p555, %s51, %s554
        %s557 = sld [smem:[#allocation4 + %s50]]
        %s558 = sadd.s32 %s557, %s556
        %s559 = smul.u32 2, %s558
        %p560 = scmp.lt.s32.totalorder %s559, 5
        %s561 = scalar_select %p560, %s559, 5
        %s562 = scalar_lea.vmem %s2, %s561
        %p563 = pneg %p95
        %p564 = pneg %p92
        %s565 = sand.u32 %s124, 1
        %s566 = scalar_lea.sflag [#allocation8], %s565
        %s567 = sand.u32 %s124, 1
        %s568 = smul.addr %s567, 256
        %s569 = scalar_lea.vmem [#allocation7], %s568
        %p570 = pneg %p137
        %p571 = pneg %p134
        %s572 = sand.u32 %s46, 1
        %s573 = scalar_lea.sflag [#allocation11], %s572
        %s574 = sand.u32 %s150, 1
        %s575 = smul.addr %s574, 256
        %s576 = scalar_lea.vmem [#allocation10], %s575
        %p577 = pneg %p163
        %p578 = pneg %p160
        %p579 = pneg %p184
        %p580 = pneg %p181
        %p581 = pneg %p205
        %p582 = pneg %p202
        %p583 = pneg %p226
        %p584 = pneg %p223
        %p585 = pneg %p247
        %p586 = pneg %p244
        %p587 = pneg %p268
        %p588 = pneg %p265
        %p589 = pneg %p289
        %p590 = pneg %p286
        %p591 = pneg %p310
        %p592 = pneg %p307
        %p593 = pneg %p331
        %p594 = pneg %p328
        %p595 = pneg %p352
        %p596 = pneg %p349
        %p597 = pneg %p378
        %p598 = pneg %p375
        %s599 = sand.u32 %s365, 1
        %s600 = scalar_lea.sflag [#allocation9], %s599
        %s601 = sand.u32 %s365, 1
        %s602 = smul.addr %s601, 256
        %s603 = scalar_lea.vmem [#allocation15], %s602
        %s604 = sld [smem:[#allocation5 + %s50]]
        %s605 = ssub.s32 %s604, 1
        %p606 = scmp.gt.s32.totalorder %s605, 0
        %s607 = scalar_select %p606, %s605, 0
        %p608 = scmp.lt.s32.totalorder %s51, %s607
        %s609 = scalar_select %p608, %s51, %s607
        %s610 = sld [smem:[#allocation4 + %s50]]
        %s611 = sadd.s32 %s610, %s609
        %s612 = smul.u32 2, %s611
        %p613 = scmp.lt.s32.totalorder %s612, 5
        %s614 = scalar_select %p613, %s612, 5
        %s615 = scalar_lea.vmem %s2, %s614
        %s616 = sld [smem:[#allocation5 + %s50]]
        %s617 = ssub.s32 %s616, 1
        %p618 = scmp.gt.s32.totalorder %s617, 0
        %s619 = scalar_select %p618, %s617, 0
        %p620 = scmp.lt.s32.totalorder %s51, %s619
        %s621 = scalar_select %p620, %s51, %s619
        %s622 = sld [smem:[#allocation4 + %s50]]
        %s623 = sadd.s32 %s622, %s621
        %s624 = smul.u32 2, %s623
        %s625 = sld [smem:[#allocation5 + %s50]]
        %s626 = ssub.s32 %s625, 1
        %p627 = scmp.gt.s32.totalorder %s626, 0
        %s628 = scalar_select %p627, %s626, 0
        %p629 = scmp.lt.s32.totalorder %s51, %s628
        %s630 = scalar_select %p629, %s51, %s628
        %s631 = sld [smem:[#allocation4 + %s50]]
        %s632 = sadd.s32 %s631, %s630
        %s633 = smul.u32 32, %s632
        %s634 = smul.u32 32, %s50
        %s635 = smul.u32 32, %s50
        %p636 = scmp.eq.s32.totalorder %s51, 0
        // Predicated region
        $region85: #{tpu_custom_call.1} parent=67 // pred_check
          %p637 = pneg %p636
        $region86: #{tpu_custom_call.1} parent=67 // pred_check_branch
          %639 = sbr.rel (%p637) target = $region88
        $region87: #{tpu_custom_call.1} parent=67 // pred_region
          %640 = vst [vmem:[#allocation2] sm:$0xff] 0.0
          %641 = vst [vmem:[#allocation2 + $0x8] sm:$0xff] 0.0
          %642 = vst [vmem:[#allocation2 + $0x10] sm:$0xff] 0.0
          %643 = vst [vmem:[#allocation2 + $0x18] sm:$0xff] 0.0
          %644 = vst [vmem:[#allocation2 + $0x20] sm:$0xff] 0.0
          %645 = vst [vmem:[#allocation2 + $0x28] sm:$0xff] 0.0
          %646 = vst [vmem:[#allocation2 + $0x30] sm:$0xff] 0.0
          %647 = vst [vmem:[#allocation2 + $0x38] sm:$0xff] 0.0
          %648 = vst [vmem:[#allocation2 + $0x40] sm:$0xff] 0.0
          %649 = vst [vmem:[#allocation2 + $0x48] sm:$0xff] 0.0
          %650 = vst [vmem:[#allocation2 + $0x50] sm:$0xff] 0.0
          %651 = vst [vmem:[#allocation2 + $0x58] sm:$0xff] 0.0
          %652 = vst [vmem:[#allocation2 + $0x60] sm:$0xff] 0.0
          %653 = vst [vmem:[#allocation2 + $0x68] sm:$0xff] 0.0
          %654 = vst [vmem:[#allocation2 + $0x70] sm:$0xff] 0.0
          %655 = vst [vmem:[#allocation2 + $0x78] sm:$0xff] 0.0
          %656 = vst [vmem:[#allocation2 + $0x80] sm:$0xff] 0.0
          %657 = vst [vmem:[#allocation2 + $0x88] sm:$0xff] 0.0
          %658 = vst [vmem:[#allocation2 + $0x90] sm:$0xff] 0.0
          %659 = vst [vmem:[#allocation2 + $0x98] sm:$0xff] 0.0
          %660 = vst [vmem:[#allocation2 + $0xa0] sm:$0xff] 0.0
          %661 = vst [vmem:[#allocation2 + $0xa8] sm:$0xff] 0.0
          %662 = vst [vmem:[#allocation2 + $0xb0] sm:$0xff] 0.0
          %663 = vst [vmem:[#allocation2 + $0xb8] sm:$0xff] 0.0
          %664 = vst [vmem:[#allocation2 + $0xc0] sm:$0xff] 0.0
          %665 = vst [vmem:[#allocation2 + $0xc8] sm:$0xff] 0.0
          %666 = vst [vmem:[#allocation2 + $0xd0] sm:$0xff] 0.0
          %667 = vst [vmem:[#allocation2 + $0xd8] sm:$0xff] 0.0
          %668 = vst [vmem:[#allocation2 + $0xe0] sm:$0xff] 0.0
          %669 = vst [vmem:[#allocation2 + $0xe8] sm:$0xff] 0.0
          %670 = vst [vmem:[#allocation2 + $0xf0] sm:$0xff] 0.0
          %671 = vst [vmem:[#allocation2 + $0xf8] sm:$0xff] 0.0
        $region88: #{tpu_custom_call.1} parent=67 // pred_fallthru
          _
        %s672 = sld [smem:[#allocation5 + %s50]]
        %p673 = scmp.lt.s32.totalorder %s51, %s672
        // Predicated region
        $region89: #{tpu_custom_call.1} parent=67 // pred_check
          %p674 = pneg %p673
        $region90: #{tpu_custom_call.1} parent=67 // pred_check_branch
          %676 = sbr.rel (%p674) target = $region92
        $region91: #{tpu_custom_call.1} parent=67 // pred_region
          %s677 = smul.u32 %s50, 256
          %v678 = vlaneseq
          %v679 = vshrl.u32 %v678, 7
          %v680 = vadd.s32 %v679, 8
          %v681 = vadd.s32 %v679, 16
          %v682 = vadd.s32 %v679, 24
          %v683 = vadd.s32 %v679, 32
          %v684 = vadd.s32 %v679, 40
          %v685 = vadd.s32 %v679, 48
          %v686 = vadd.s32 %v679, 56
          %v687 = vadd.s32 %v679, 64
          %v688 = vadd.s32 %v679, 72
          %v689 = vadd.s32 %v679, 80
          %v690 = vadd.s32 %v679, 88
          %v691 = vadd.s32 %v679, 96
          %v692 = vadd.s32 %v679, 104
          %v693 = vadd.s32 %v679, 112
          %v694 = vadd.s32 %v679, 120
          %v695 = vadd.s32 %v679, 128
          %v696 = vadd.s32 %v679, 136
          %v697 = vadd.s32 %v679, 144
          %v698 = vadd.s32 %v679, 152
          %v699 = vadd.s32 %v679, 160
          %v700 = vadd.s32 %v679, 168
          %v701 = vadd.s32 %v679, 176
          %v702 = vadd.s32 %v679, 184
          %v703 = vadd.s32 %v679, 192
          %v704 = vadd.s32 %v679, 200
          %v705 = vadd.s32 %v679, 208
          %v706 = vadd.s32 %v679, 216
          %v707 = vadd.s32 %v679, 224
          %v708 = vadd.s32 %v679, 232
          %v709 = vadd.s32 %v679, 240
          %v710 = vadd.s32 %v679, 248
          %v711 = vstv %s677
          %v712 = vadd.s32 %v711, %v679
          %v713 = vadd.s32 %v711, %v680
          %v714 = vadd.s32 %v711, %v681
          %v715 = vadd.s32 %v711, %v682
          %v716 = vadd.s32 %v711, %v683
          %v717 = vadd.s32 %v711, %v684
          %v718 = vadd.s32 %v711, %v685
          %v719 = vadd.s32 %v711, %v686
          %v720 = vadd.s32 %v711, %v687
          %v721 = vadd.s32 %v711, %v688
          %v722 = vadd.s32 %v711, %v689
          %v723 = vadd.s32 %v711, %v690
          %v724 = vadd.s32 %v711, %v691
          %v725 = vadd.s32 %v711, %v692
          %v726 = vadd.s32 %v711, %v693
          %v727 = vadd.s32 %v711, %v694
          %v728 = vadd.s32 %v711, %v695
          %v729 = vadd.s32 %v711, %v696
          %v730 = vadd.s32 %v711, %v697
          %v731 = vadd.s32 %v711, %v698
          %v732 = vadd.s32 %v711, %v699
          %v733 = vadd.s32 %v711, %v700
          %v734 = vadd.s32 %v711, %v701
          %v735 = vadd.s32 %v711, %v702
          %v736 = vadd.s32 %v711, %v703
          %v737 = vadd.s32 %v711, %v704
          %v738 = vadd.s32 %v711, %v705
          %v739 = vadd.s32 %v711, %v706
          %v740 = vadd.s32 %v711, %v707
          %v741 = vadd.s32 %v711, %v708
          %v742 = vadd.s32 %v711, %v709
          %v743 = vadd.s32 %v711, %v710
          %v744 = vld [vmem:[%s615] sm:$0x3]
          %v745 = vlaneseq
          %v746 = vshrl.u32 %v745, 7
          %v747 = vsub.s32 0, %v746
          %v748 = vrot.slane %v744, %v747
          %v749 = vlaneseq
          %v750 = vshrl.u32 %v749, 7
          %v751 = vsub.s32 1, %v750
          %v752 = vrot.slane %v744, %v751
          %vm753 = vcmp.eq.s32.totalorder %v748, %v712
          %vm754 = vcmp.eq.s32.totalorder %v752, %v712
          %vm755 = vcmp.eq.s32.totalorder %v748, %v713
          %vm756 = vcmp.eq.s32.totalorder %v752, %v713
          %vm757 = vcmp.eq.s32.totalorder %v748, %v714
          %vm758 = vcmp.eq.s32.totalorder %v752, %v714
          %vm759 = vcmp.eq.s32.totalorder %v748, %v715
          %vm760 = vcmp.eq.s32.totalorder %v752, %v715
          %vm761 = vcmp.eq.s32.totalorder %v748, %v716
          %vm762 = vcmp.eq.s32.totalorder %v752, %v716
          %vm763 = vcmp.eq.s32.totalorder %v748, %v717
          %vm764 = vcmp.eq.s32.totalorder %v752, %v717
          %vm765 = vcmp.eq.s32.totalorder %v748, %v718
          %vm766 = vcmp.eq.s32.totalorder %v752, %v718
          %vm767 = vcmp.eq.s32.totalorder %v748, %v719
          %vm768 = vcmp.eq.s32.totalorder %v752, %v719
          %vm769 = vcmp.eq.s32.totalorder %v748, %v720
          %vm770 = vcmp.eq.s32.totalorder %v752, %v720
          %vm771 = vcmp.eq.s32.totalorder %v748, %v721
          %vm772 = vcmp.eq.s32.totalorder %v752, %v721
          %vm773 = vcmp.eq.s32.totalorder %v748, %v722
          %vm774 = vcmp.eq.s32.totalorder %v752, %v722
          %vm775 = vcmp.eq.s32.totalorder %v748, %v723
          %vm776 = vcmp.eq.s32.totalorder %v752, %v723
          %vm777 = vcmp.eq.s32.totalorder %v748, %v724
          %vm778 = vcmp.eq.s32.totalorder %v752, %v724
          %vm779 = vcmp.eq.s32.totalorder %v748, %v725
          %vm780 = vcmp.eq.s32.totalorder %v752, %v725
          %vm781 = vcmp.eq.s32.totalorder %v748, %v726
          %vm782 = vcmp.eq.s32.totalorder %v752, %v726
          %vm783 = vcmp.eq.s32.totalorder %v748, %v727
          %vm784 = vcmp.eq.s32.totalorder %v752, %v727
          %vm785 = vcmp.eq.s32.totalorder %v748, %v728
          %vm786 = vcmp.eq.s32.totalorder %v752, %v728
          %vm787 = vcmp.eq.s32.totalorder %v748, %v729
          %vm788 = vcmp.eq.s32.totalorder %v752, %v729
          %vm789 = vcmp.eq.s32.totalorder %v748, %v730
          %vm790 = vcmp.eq.s32.totalorder %v752, %v730
          %vm791 = vcmp.eq.s32.totalorder %v748, %v731
          %vm792 = vcmp.eq.s32.totalorder %v752, %v731
          %vm793 = vcmp.eq.s32.totalorder %v748, %v732
          %vm794 = vcmp.eq.s32.totalorder %v752, %v732
          %vm795 = vcmp.eq.s32.totalorder %v748, %v733
          %vm796 = vcmp.eq.s32.totalorder %v752, %v733
          %vm797 = vcmp.eq.s32.totalorder %v748, %v734
          %vm798 = vcmp.eq.s32.totalorder %v752, %v734
          %vm799 = vcmp.eq.s32.totalorder %v748, %v735
          %vm800 = vcmp.eq.s32.totalorder %v752, %v735
          %vm801 = vcmp.eq.s32.totalorder %v748, %v736
          %vm802 = vcmp.eq.s32.totalorder %v752, %v736
          %vm803 = vcmp.eq.s32.totalorder %v748, %v737
          %vm804 = vcmp.eq.s32.totalorder %v752, %v737
          %vm805 = vcmp.eq.s32.totalorder %v748, %v738
          %vm806 = vcmp.eq.s32.totalorder %v752, %v738
          %vm807 = vcmp.eq.s32.totalorder %v748, %v739
          %vm808 = vcmp.eq.s32.totalorder %v752, %v739
          %vm809 = vcmp.eq.s32.totalorder %v748, %v740
          %vm810 = vcmp.eq.s32.totalorder %v752, %v740
          %vm811 = vcmp.eq.s32.totalorder %v748, %v741
          %vm812 = vcmp.eq.s32.totalorder %v752, %v741
          %vm813 = vcmp.eq.s32.totalorder %v748, %v742
          %vm814 = vcmp.eq.s32.totalorder %v752, %v742
          %vm815 = vcmp.eq.s32.totalorder %v748, %v743
          %vm816 = vcmp.eq.s32.totalorder %v752, %v743
          %v817 = vsel %vm753, 1, 0
          %v818 = vsel %vm754, 1, 0
          %v819 = vsel %vm755, 1, 0
          %v820 = vsel %vm756, 1, 0
          %v821 = vsel %vm757, 1, 0
          %v822 = vsel %vm758, 1, 0
          %v823 = vsel %vm759, 1, 0
          %v824 = vsel %vm760, 1, 0
          %v825 = vsel %vm761, 1, 0
          %v826 = vsel %vm762, 1, 0
          %v827 = vsel %vm763, 1, 0
          %v828 = vsel %vm764, 1, 0
          %v829 = vsel %vm765, 1, 0
          %v830 = vsel %vm766, 1, 0
          %v831 = vsel %vm767, 1, 0
          %v832 = vsel %vm768, 1, 0
          %v833 = vsel %vm769, 1, 0
          %v834 = vsel %vm770, 1, 0
          %v835 = vsel %vm771, 1, 0
          %v836 = vsel %vm772, 1, 0
          %v837 = vsel %vm773, 1, 0
          %v838 = vsel %vm774, 1, 0
          %v839 = vsel %vm775, 1, 0
          %v840 = vsel %vm776, 1, 0
          %v841 = vsel %vm777, 1, 0
          %v842 = vsel %vm778, 1, 0
          %v843 = vsel %vm779, 1, 0
          %v844 = vsel %vm780, 1, 0
          %v845 = vsel %vm781, 1, 0
          %v846 = vsel %vm782, 1, 0
          %v847 = vsel %vm783, 1, 0
          %v848 = vsel %vm784, 1, 0
          %v849 = vsel %vm785, 1, 0
          %v850 = vsel %vm786, 1, 0
          %v851 = vsel %vm787, 1, 0
          %v852 = vsel %vm788, 1, 0
          %v853 = vsel %vm789, 1, 0
          %v854 = vsel %vm790, 1, 0
          %v855 = vsel %vm791, 1, 0
          %v856 = vsel %vm792, 1, 0
          %v857 = vsel %vm793, 1, 0
          %v858 = vsel %vm794, 1, 0
          %v859 = vsel %vm795, 1, 0
          %v860 = vsel %vm796, 1, 0
          %v861 = vsel %vm797, 1, 0
          %v862 = vsel %vm798, 1, 0
          %v863 = vsel %vm799, 1, 0
          %v864 = vsel %vm800, 1, 0
          %v865 = vsel %vm801, 1, 0
          %v866 = vsel %vm802, 1, 0
          %v867 = vsel %vm803, 1, 0
          %v868 = vsel %vm804, 1, 0
          %v869 = vsel %vm805, 1, 0
          %v870 = vsel %vm806, 1, 0
          %v871 = vsel %vm807, 1, 0
          %v872 = vsel %vm808, 1, 0
          %v873 = vsel %vm809, 1, 0
          %v874 = vsel %vm810, 1, 0
          %v875 = vsel %vm811, 1, 0
          %v876 = vsel %vm812, 1, 0
          %v877 = vsel %vm813, 1, 0
          %v878 = vsel %vm814, 1, 0
          %v879 = vsel %vm815, 1, 0
          %v880 = vsel %vm816, 1, 0
          %v881 = vcvt.s32.f32 %v817
          %v882 = vcvt.s32.f32 %v818
          %v883 = vcvt.s32.f32 %v819
          %v884 = vcvt.s32.f32 %v820
          %v885 = vcvt.s32.f32 %v821
          %v886 = vcvt.s32.f32 %v822
          %v887 = vcvt.s32.f32 %v823
          %v888 = vcvt.s32.f32 %v824
          %v889 = vcvt.s32.f32 %v825
          %v890 = vcvt.s32.f32 %v826
          %v891 = vcvt.s32.f32 %v827
          %v892 = vcvt.s32.f32 %v828
          %v893 = vcvt.s32.f32 %v829
          %v894 = vcvt.s32.f32 %v830
          %v895 = vcvt.s32.f32 %v831
          %v896 = vcvt.s32.f32 %v832
          %v897 = vcvt.s32.f32 %v833
          %v898 = vcvt.s32.f32 %v834
          %v899 = vcvt.s32.f32 %v835
          %v900 = vcvt.s32.f32 %v836
          %v901 = vcvt.s32.f32 %v837
          %v902 = vcvt.s32.f32 %v838
          %v903 = vcvt.s32.f32 %v839
          %v904 = vcvt.s32.f32 %v840
          %v905 = vcvt.s32.f32 %v841
          %v906 = vcvt.s32.f32 %v842
          %v907 = vcvt.s32.f32 %v843
          %v908 = vcvt.s32.f32 %v844
          %v909 = vcvt.s32.f32 %v845
          %v910 = vcvt.s32.f32 %v846
          %v911 = vcvt.s32.f32 %v847
          %v912 = vcvt.s32.f32 %v848
          %v913 = vcvt.s32.f32 %v849
          %v914 = vcvt.s32.f32 %v850
          %v915 = vcvt.s32.f32 %v851
          %v916 = vcvt.s32.f32 %v852
          %v917 = vcvt.s32.f32 %v853
          %v918 = vcvt.s32.f32 %v854
          %v919 = vcvt.s32.f32 %v855
          %v920 = vcvt.s32.f32 %v856
          %v921 = vcvt.s32.f32 %v857
          %v922 = vcvt.s32.f32 %v858
          %v923 = vcvt.s32.f32 %v859
          %v924 = vcvt.s32.f32 %v860
          %v925 = vcvt.s32.f32 %v861
          %v926 = vcvt.s32.f32 %v862
          %v927 = vcvt.s32.f32 %v863
          %v928 = vcvt.s32.f32 %v864
          %v929 = vcvt.s32.f32 %v865
          %v930 = vcvt.s32.f32 %v866
          %v931 = vcvt.s32.f32 %v867
          %v932 = vcvt.s32.f32 %v868
          %v933 = vcvt.s32.f32 %v869
          %v934 = vcvt.s32.f32 %v870
          %v935 = vcvt.s32.f32 %v871
          %v936 = vcvt.s32.f32 %v872
          %v937 = vcvt.s32.f32 %v873
          %v938 = vcvt.s32.f32 %v874
          %v939 = vcvt.s32.f32 %v875
          %v940 = vcvt.s32.f32 %v876
          %v941 = vcvt.s32.f32 %v877
          %v942 = vcvt.s32.f32 %v878
          %v943 = vcvt.s32.f32 %v879
          %v944 = vcvt.s32.f32 %v880
          %v945 = vld [vmem:[%s529] sm:$0xff]
          %v946 = vld [vmem:[%s529 + $0x8] sm:$0xff]
          %v947 = vld [vmem:[%s529 + $0x10] sm:$0xff]
          %v948 = vld [vmem:[%s529 + $0x18] sm:$0xff]
          %v949 = vld [vmem:[%s529 + $0x20] sm:$0xff]
          %v950 = vld [vmem:[%s529 + $0x28] sm:$0xff]
          %v951 = vld [vmem:[%s529 + $0x30] sm:$0xff]
          %v952 = vld [vmem:[%s529 + $0x38] sm:$0xff]
          %v953 = vld [vmem:[%s529 + $0x40] sm:$0xff]
          %v954 = vld [vmem:[%s529 + $0x48] sm:$0xff]
          %v955 = vld [vmem:[%s529 + $0x50] sm:$0xff]
          %v956 = vld [vmem:[%s529 + $0x58] sm:$0xff]
          %v957 = vld [vmem:[%s529 + $0x60] sm:$0xff]
          %v958 = vld [vmem:[%s529 + $0x68] sm:$0xff]
          %v959 = vld [vmem:[%s529 + $0x70] sm:$0xff]
          %v960 = vld [vmem:[%s529 + $0x78] sm:$0xff]
          %v961 = vld [vmem:[%s529 + $0x80] sm:$0xff]
          %v962 = vld [vmem:[%s529 + $0x88] sm:$0xff]
          %v963 = vld [vmem:[%s529 + $0x90] sm:$0xff]
          %v964 = vld [vmem:[%s529 + $0x98] sm:$0xff]
          %v965 = vld [vmem:[%s529 + $0xa0] sm:$0xff]
          %v966 = vld [vmem:[%s529 + $0xa8] sm:$0xff]
          %v967 = vld [vmem:[%s529 + $0xb0] sm:$0xff]
          %v968 = vld [vmem:[%s529 + $0xb8] sm:$0xff]
          %v969 = vld [vmem:[%s529 + $0xc0] sm:$0xff]
          %v970 = vld [vmem:[%s529 + $0xc8] sm:$0xff]
          %v971 = vld [vmem:[%s529 + $0xd0] sm:$0xff]
          %v972 = vld [vmem:[%s529 + $0xd8] sm:$0xff]
          %v973 = vld [vmem:[%s529 + $0xe0] sm:$0xff]
          %v974 = vld [vmem:[%s529 + $0xe8] sm:$0xff]
          %v975 = vld [vmem:[%s529 + $0xf0] sm:$0xff]
          %v976 = vld [vmem:[%s529 + $0xf8] sm:$0xff]
          %v977 = vmax.f32 %v945, 0.0
          %v978 = vmax.f32 %v946, 0.0
          %v979 = vmax.f32 %v947, 0.0
          %v980 = vmax.f32 %v948, 0.0
          %v981 = vmax.f32 %v949, 0.0
          %v982 = vmax.f32 %v950, 0.0
          %v983 = vmax.f32 %v951, 0.0
          %v984 = vmax.f32 %v952, 0.0
          %v985 = vmax.f32 %v953, 0.0
          %v986 = vmax.f32 %v954, 0.0
          %v987 = vmax.f32 %v955, 0.0
          %v988 = vmax.f32 %v956, 0.0
          %v989 = vmax.f32 %v957, 0.0
          %v990 = vmax.f32 %v958, 0.0
          %v991 = vmax.f32 %v959, 0.0
          %v992 = vmax.f32 %v960, 0.0
          %v993 = vmax.f32 %v961, 0.0
          %v994 = vmax.f32 %v962, 0.0
          %v995 = vmax.f32 %v963, 0.0
          %v996 = vmax.f32 %v964, 0.0
          %v997 = vmax.f32 %v965, 0.0
          %v998 = vmax.f32 %v966, 0.0
          %v999 = vmax.f32 %v967, 0.0
          %v1000 = vmax.f32 %v968, 0.0
          %v1001 = vmax.f32 %v969, 0.0
          %v1002 = vmax.f32 %v970, 0.0
          %v1003 = vmax.f32 %v971, 0.0
          %v1004 = vmax.f32 %v972, 0.0
          %v1005 = vmax.f32 %v973, 0.0
          %v1006 = vmax.f32 %v974, 0.0
          %v1007 = vmax.f32 %v975, 0.0
          %v1008 = vmax.f32 %v976, 0.0
          %v1009 = vld [vmem:[#allocation2] sm:$0xff]
          %v1010 = vld [vmem:[#allocation2 + $0x8] sm:$0xff]
          %v1011 = vld [vmem:[#allocation2 + $0x10] sm:$0xff]
          %v1012 = vld [vmem:[#allocation2 + $0x18] sm:$0xff]
          %v1013 = vld [vmem:[#allocation2 + $0x20] sm:$0xff]
          %v1014 = vld [vmem:[#allocation2 + $0x28] sm:$0xff]
          %v1015 = vld [vmem:[#allocation2 + $0x30] sm:$0xff]
          %v1016 = vld [vmem:[#allocation2 + $0x38] sm:$0xff]
          %v1017 = vld [vmem:[#allocation2 + $0x40] sm:$0xff]
          %v1018 = vld [vmem:[#allocation2 + $0x48] sm:$0xff]
          %v1019 = vld [vmem:[#allocation2 + $0x50] sm:$0xff]
          %v1020 = vld [vmem:[#allocation2 + $0x58] sm:$0xff]
          %v1021 = vld [vmem:[#allocation2 + $0x60] sm:$0xff]
          %v1022 = vld [vmem:[#allocation2 + $0x68] sm:$0xff]
          %v1023 = vld [vmem:[#allocation2 + $0x70] sm:$0xff]
          %v1024 = vld [vmem:[#allocation2 + $0x78] sm:$0xff]
          %v1025 = vld [vmem:[#allocation2 + $0x80] sm:$0xff]
          %v1026 = vld [vmem:[#allocation2 + $0x88] sm:$0xff]
          %v1027 = vld [vmem:[#allocation2 + $0x90] sm:$0xff]
          %v1028 = vld [vmem:[#allocation2 + $0x98] sm:$0xff]
          %v1029 = vld [vmem:[#allocation2 + $0xa0] sm:$0xff]
          %v1030 = vld [vmem:[#allocation2 + $0xa8] sm:$0xff]
          %v1031 = vld [vmem:[#allocation2 + $0xb0] sm:$0xff]
          %v1032 = vld [vmem:[#allocation2 + $0xb8] sm:$0xff]
          %v1033 = vld [vmem:[#allocation2 + $0xc0] sm:$0xff]
          %v1034 = vld [vmem:[#allocation2 + $0xc8] sm:$0xff]
          %v1035 = vld [vmem:[#allocation2 + $0xd0] sm:$0xff]
          %v1036 = vld [vmem:[#allocation2 + $0xd8] sm:$0xff]
          %v1037 = vld [vmem:[#allocation2 + $0xe0] sm:$0xff]
          %v1038 = vld [vmem:[#allocation2 + $0xe8] sm:$0xff]
          %v1039 = vld [vmem:[#allocation2 + $0xf0] sm:$0xff]
          %v1040 = vld [vmem:[#allocation2 + $0xf8] sm:$0xff]
          %1041 = vmatprep.subr.mxu0 0.0
          %1042 = vmatpush1.msra.mxu0 %v977
          %1043 = vmatprep.subr.mxu0 0.0
          %1044 = vmatpush1.msra.mxu0 %v978
          %1045 = vmatprep.subr.mxu0 0.0
          %1046 = vmatpush1.msra.mxu0 %v979
          %1047 = vmatprep.subr.mxu0 0.0
          %1048 = vmatpush1.msra.mxu0 %v980
          %1049 = vmatprep.subr.mxu0 0.0
          %1050 = vmatpush1.msra.mxu0 %v981
          %1051 = vmatprep.subr.mxu0 0.0
          %1052 = vmatpush1.msra.mxu0 %v982
          %1053 = vmatprep.subr.mxu0 0.0
          %1054 = vmatpush1.msra.mxu0 %v983
          %1055 = vmatprep.subr.mxu0 0.0
          %1056 = vmatpush1.msra.mxu0 %v984
          %1057 = vmatprep.subr.mxu0 0.0
          %1058 = vmatpush1.msra.mxu0 %v985
          %1059 = vmatprep.subr.mxu0 0.0
          %1060 = vmatpush1.msra.mxu0 %v986
          %1061 = vmatprep.subr.mxu0 0.0
          %1062 = vmatpush1.msra.mxu0 %v987
          %1063 = vmatprep.subr.mxu0 0.0
          %1064 = vmatpush1.msra.mxu0 %v988
          %1065 = vmatprep.subr.mxu0 0.0
          %1066 = vmatpush1.msra.mxu0 %v989
          %1067 = vmatprep.subr.mxu0 0.0
          %1068 = vmatpush1.msra.mxu0 %v990
          %1069 = vmatprep.subr.mxu0 0.0
          %1070 = vmatpush1.msra.mxu0 %v991
          %1071 = vmatprep.subr.mxu0 0.0
          %1072 = vmatpush1.msra.mxu0 %v992
          %1073 = vmatprep.subr.mxu0 0.0
          %1074 = vmatpush1.msra.mxu0 %v993
          %1075 = vmatprep.subr.mxu0 0.0
          %1076 = vmatpush1.msra.mxu0 %v994
          %1077 = vmatprep.subr.mxu0 0.0
          %1078 = vmatpush1.msra.mxu0 %v995
          %1079 = vmatprep.subr.mxu0 0.0
          %1080 = vmatpush1.msra.mxu0 %v996
          %1081 = vmatprep.subr.mxu0 0.0
          %1082 = vmatpush1.msra.mxu0 %v997
          %1083 = vmatprep.subr.mxu0 0.0
          %1084 = vmatpush1.msra.mxu0 %v998
          %1085 = vmatprep.subr.mxu0 0.0
          %1086 = vmatpush1.msra.mxu0 %v999
          %1087 = vmatprep.subr.mxu0 0.0
          %1088 = vmatpush1.msra.mxu0 %v1000
          %1089 = vmatprep.subr.mxu0 0.0
          %1090 = vmatpush1.msra.mxu0 %v1001
          %1091 = vmatprep.subr.mxu0 0.0
          %1092 = vmatpush1.msra.mxu0 %v1002
          %1093 = vmatprep.subr.mxu0 0.0
          %1094 = vmatpush1.msra.mxu0 %v1003
          %1095 = vmatprep.subr.mxu0 0.0
          %1096 = vmatpush1.msra.mxu0 %v1004
          %1097 = vmatprep.subr.mxu0 0.0
          %1098 = vmatpush1.msra.mxu0 %v1005
          %1099 = vmatprep.subr.mxu0 0.0
          %1100 = vmatpush1.msra.mxu0 %v1006
          %1101 = vmatprep.subr.mxu0 0.0
          %1102 = vmatpush1.msra.mxu0 %v1007
          %1103 = vmatprep.subr.mxu0 0.0
          %1104 = vmatpush1.msra.mxu0 %v1008
          %1105 = vmatprep.mubr.f32.mxu0 %v882
          %1106 = vmatmul.mubr.f32.gmra.mrb[0].mxu0 %v881
          %v1107 = vpop.f32.mrb[0].mxu0
          %v1108 = vadd.f32 0.0, %v1107
          %v1109 = vpop.f32.mrb[0].mxu0
          %1110 = vmatprep.mubr.f32.mxu0 %v884
          %1111 = vmatmul.mubr.f32.gmra.mrb[0].mxu0 %v883
          %v1112 = vpop.f32.mrb[0].mxu0
          %v1113 = vadd.f32 0.0, %v1112
          %v1114 = vpop.f32.mrb[0].mxu0
          %1115 = vmatprep.mubr.f32.mxu0 %v886
          %1116 = vmatmul.mubr.f32.gmra.mrb[0].mxu0 %v885
          %v1117 = vpop.f32.mrb[0].mxu0
          %v1118 = vadd.f32 0.0, %v1117
          %v1119 = vpop.f32.mrb[0].mxu0
          %1120 = vmatprep.mubr.f32.mxu0 %v888
          %1121 = vmatmul.mubr.f32.gmra.mrb[0].mxu0 %v887
          %v1122 = vpop.f32.mrb[0].mxu0
          %v1123 = vadd.f32 0.0, %v1122
          %v1124 = vpop.f32.mrb[0].mxu0
          %1125 = vmatprep.mubr.f32.mxu0 %v890
          %1126 = vmatmul.mubr.f32.gmra.mrb[0].mxu0 %v889
          %v1127 = vpop.f32.mrb[0].mxu0
          %v1128 = vadd.f32 0.0, %v1127
          %v1129 = vpop.f32.mrb[0].mxu0
          %1130 = vmatprep.mubr.f32.mxu0 %v892
          %1131 = vmatmul.mubr.f32.gmra.mrb[0].mxu0 %v891
          %v1132 = vpop.f32.mrb[0].mxu0
          %v1133 = vadd.f32 0.0, %v1132
          %v1134 = vpop.f32.mrb[0].mxu0
          %1135 = vmatprep.mubr.f32.mxu0 %v894
          %1136 = vmatmul.mubr.f32.gmra.mrb[0].mxu0 %v893
          %v1137 = vpop.f32.mrb[0].mxu0
          %v1138 = vadd.f32 0.0, %v1137
          %v1139 = vpop.f32.mrb[0].mxu0
          %1140 = vmatprep.mubr.f32.mxu0 %v896
          %1141 = vmatmul.mubr.f32.gmra.mrb[0].mxu0 %v895
          %v1142 = vpop.f32.mrb[0].mxu0
          %v1143 = vadd.f32 0.0, %v1142
          %v1144 = vpop.f32.mrb[0].mxu0
          %1145 = vmatprep.mubr.f32.mxu0 %v898
          %1146 = vmatmul.mubr.f32.gmra.mrb[0].mxu0 %v897
          %v1147 = vpop.f32.mrb[0].mxu0
          %v1148 = vadd.f32 0.0, %v1147
          %v1149 = vpop.f32.mrb[0].mxu0
          %1150 = vmatprep.mubr.f32.mxu0 %v900
          %1151 = vmatmul.mubr.f32.gmra.mrb[0].mxu0 %v899
          %v1152 = vpop.f32.mrb[0].mxu0
          %v1153 = vadd.f32 0.0, %v1152
          %v1154 = vpop.f32.mrb[0].mxu0
          %1155 = vmatprep.mubr.f32.mxu0 %v902
          %1156 = vmatmul.mubr.f32.gmra.mrb[0].mxu0 %v901
          %v1157 = vpop.f32.mrb[0].mxu0
          %v1158 = vadd.f32 0.0, %v1157
          %v1159 = vpop.f32.mrb[0].mxu0
          %1160 = vmatprep.mubr.f32.mxu0 %v904
          %1161 = vmatmul.mubr.f32.gmra.mrb[0].mxu0 %v903
          %v1162 = vpop.f32.mrb[0].mxu0
          %v1163 = vadd.f32 0.0, %v1162
          %v1164 = vpop.f32.mrb[0].mxu0
          %1165 = vmatprep.mubr.f32.mxu0 %v906
          %1166 = vmatmul.mubr.f32.gmra.mrb[0].mxu0 %v905
          %v1167 = vpop.f32.mrb[0].mxu0
          %v1168 = vadd.f32 0.0, %v1167
          %v1169 = vpop.f32.mrb[0].mxu0
          %1170 = vmatprep.mubr.f32.mxu0 %v908
          %1171 = vmatmul.mubr.f32.gmra.mrb[0].mxu0 %v907
          %v1172 = vpop.f32.mrb[0].mxu0
          %v1173 = vadd.f32 0.0, %v1172
          %v1174 = vpop.f32.mrb[0].mxu0
          %1175 = vmatprep.mubr.f32.mxu0 %v910
          %1176 = vmatmul.mubr.f32.gmra.mrb[0].mxu0 %v909
          %v1177 = vpop.f32.mrb[0].mxu0
          %v1178 = vadd.f32 0.0, %v1177
          %v1179 = vpop.f32.mrb[0].mxu0
          %1180 = vmatprep.mubr.f32.mxu0 %v912
          %1181 = vmatmul.mubr.f32.gmra.mrb[0].mxu0 %v911
          %v1182 = vpop.f32.mrb[0].mxu0
          %v1183 = vadd.f32 0.0, %v1182
          %v1184 = vpop.f32.mrb[0].mxu0
          %1185 = vmatprep.mubr.f32.mxu0 %v914
          %1186 = vmatmul.mubr.f32.gmra.mrb[0].mxu0 %v913
          %v1187 = vpop.f32.mrb[0].mxu0
          %v1188 = vadd.f32 0.0, %v1187
          %v1189 = vpop.f32.mrb[0].mxu0
          %1190 = vmatprep.mubr.f32.mxu0 %v916
          %1191 = vmatmul.mubr.f32.gmra.mrb[0].mxu0 %v915
          %v1192 = vpop.f32.mrb[0].mxu0
          %v1193 = vadd.f32 0.0, %v1192
          %v1194 = vpop.f32.mrb[0].mxu0
          %1195 = vmatprep.mubr.f32.mxu0 %v918
          %1196 = vmatmul.mubr.f32.gmra.mrb[0].mxu0 %v917
          %v1197 = vpop.f32.mrb[0].mxu0
          %v1198 = vadd.f32 0.0, %v1197
          %v1199 = vpop.f32.mrb[0].mxu0
          %1200 = vmatprep.mubr.f32.mxu0 %v920
          %1201 = vmatmul.mubr.f32.gmra.mrb[0].mxu0 %v919
          %v1202 = vpop.f32.mrb[0].mxu0
          %v1203 = vadd.f32 0.0, %v1202
          %v1204 = vpop.f32.mrb[0].mxu0
          %1205 = vmatprep.mubr.f32.mxu0 %v922
          %1206 = vmatmul.mubr.f32.gmra.mrb[0].mxu0 %v921
          %v1207 = vpop.f32.mrb[0].mxu0
          %v1208 = vadd.f32 0.0, %v1207
          %v1209 = vpop.f32.mrb[0].mxu0
          %1210 = vmatprep.mubr.f32.mxu0 %v924
          %1211 = vmatmul.mubr.f32.gmra.mrb[0].mxu0 %v923
          %v1212 = vpop.f32.mrb[0].mxu0
          %v1213 = vadd.f32 0.0, %v1212
          %v1214 = vpop.f32.mrb[0].mxu0
          %1215 = vmatprep.mubr.f32.mxu0 %v926
          %1216 = vmatmul.mubr.f32.gmra.mrb[0].mxu0 %v925
          %v1217 = vpop.f32.mrb[0].mxu0
          %v1218 = vadd.f32 0.0, %v1217
          %v1219 = vpop.f32.mrb[0].mxu0
          %1220 = vmatprep.mubr.f32.mxu0 %v928
          %1221 = vmatmul.mubr.f32.gmra.mrb[0].mxu0 %v927
          %v1222 = vpop.f32.mrb[0].mxu0
          %v1223 = vadd.f32 0.0, %v1222
          %v1224 = vpop.f32.mrb[0].mxu0
          %1225 = vmatprep.mubr.f32.mxu0 %v930
          %1226 = vmatmul.mubr.f32.gmra.mrb[0].mxu0 %v929
          %v1227 = vpop.f32.mrb[0].mxu0
          %v1228 = vadd.f32 0.0, %v1227
          %v1229 = vpop.f32.mrb[0].mxu0
          %1230 = vmatprep.mubr.f32.mxu0 %v932
          %1231 = vmatmul.mubr.f32.gmra.mrb[0].mxu0 %v931
          %v1232 = vpop.f32.mrb[0].mxu0
          %v1233 = vadd.f32 0.0, %v1232
          %v1234 = vpop.f32.mrb[0].mxu0
          %1235 = vmatprep.mubr.f32.mxu0 %v934
          %1236 = vmatmul.mubr.f32.gmra.mrb[0].mxu0 %v933
          %v1237 = vpop.f32.mrb[0].mxu0
          %v1238 = vadd.f32 0.0, %v1237
          %v1239 = vpop.f32.mrb[0].mxu0
          %1240 = vmatprep.mubr.f32.mxu0 %v936
          %1241 = vmatmul.mubr.f32.gmra.mrb[0].mxu0 %v935
          %v1242 = vpop.f32.mrb[0].mxu0
          %v1243 = vadd.f32 0.0, %v1242
          %v1244 = vpop.f32.mrb[0].mxu0
          %1245 = vmatprep.mubr.f32.mxu0 %v938
          %1246 = vmatmul.mubr.f32.gmra.mrb[0].mxu0 %v937
          %v1247 = vpop.f32.mrb[0].mxu0
          %v1248 = vadd.f32 0.0, %v1247
          %v1249 = vpop.f32.mrb[0].mxu0
          %1250 = vmatprep.mubr.f32.mxu0 %v940
          %1251 = vmatmul.mubr.f32.gmra.mrb[0].mxu0 %v939
          %v1252 = vpop.f32.mrb[0].mxu0
          %v1253 = vadd.f32 0.0, %v1252
          %v1254 = vpop.f32.mrb[0].mxu0
          %1255 = vmatprep.mubr.f32.mxu0 %v942
          %1256 = vmatmul.mubr.f32.gmra.mrb[0].mxu0 %v941
          %v1257 = vpop.f32.mrb[0].mxu0
          %v1258 = vadd.f32 0.0, %v1257
          %v1259 = vpop.f32.mrb[0].mxu0
          %1260 = vmatprep.mubr.f32.mxu0 %v944
          %1261 = vmatmul.mubr.f32.gmra.mrb[0].mxu0 %v943
          %v1262 = vpop.f32.mrb[0].mxu0
          %v1263 = vadd.f32 0.0, %v1262
          %v1264 = vpop.f32.mrb[0].mxu0
          %1265 = vdwg.mxu0
          %v1266 = vadd.f32 %v1009, %v1108
          %v1267 = vadd.f32 %v1010, %v1113
          %v1268 = vadd.f32 %v1011, %v1118
          %v1269 = vadd.f32 %v1012, %v1123
          %v1270 = vadd.f32 %v1013, %v1128
          %v1271 = vadd.f32 %v1014, %v1133
          %v1272 = vadd.f32 %v1015, %v1138
          %v1273 = vadd.f32 %v1016, %v1143
          %v1274 = vadd.f32 %v1017, %v1148
          %v1275 = vadd.f32 %v1018, %v1153
          %v1276 = vadd.f32 %v1019, %v1158
          %v1277 = vadd.f32 %v1020, %v1163
          %v1278 = vadd.f32 %v1021, %v1168
          %v1279 = vadd.f32 %v1022, %v1173
          %v1280 = vadd.f32 %v1023, %v1178
          %v1281 = vadd.f32 %v1024, %v1183
          %v1282 = vadd.f32 %v1025, %v1188
          %v1283 = vadd.f32 %v1026, %v1193
          %v1284 = vadd.f32 %v1027, %v1198
          %v1285 = vadd.f32 %v1028, %v1203
          %v1286 = vadd.f32 %v1029, %v1208
          %v1287 = vadd.f32 %v1030, %v1213
          %v1288 = vadd.f32 %v1031, %v1218
          %v1289 = vadd.f32 %v1032, %v1223
          %v1290 = vadd.f32 %v1033, %v1228
          %v1291 = vadd.f32 %v1034, %v1233
          %v1292 = vadd.f32 %v1035, %v1238
          %v1293 = vadd.f32 %v1036, %v1243
          %v1294 = vadd.f32 %v1037, %v1248
          %v1295 = vadd.f32 %v1038, %v1253
          %v1296 = vadd.f32 %v1039, %v1258
          %v1297 = vadd.f32 %v1040, %v1263
          %1298 = vst [vmem:[#allocation2] sm:$0xff] %v1266
          %1299 = vst [vmem:[#allocation2 + $0x8] sm:$0xff] %v1267
          %1300 = vst [vmem:[#allocation2 + $0x10] sm:$0xff] %v1268
          %1301 = vst [vmem:[#allocation2 + $0x18] sm:$0xff] %v1269
          %1302 = vst [vmem:[#allocation2 + $0x20] sm:$0xff] %v1270
          %1303 = vst [vmem:[#allocation2 + $0x28] sm:$0xff] %v1271
          %1304 = vst [vmem:[#allocation2 + $0x30] sm:$0xff] %v1272
          %1305 = vst [vmem:[#allocation2 + $0x38] sm:$0xff] %v1273
          %1306 = vst [vmem:[#allocation2 + $0x40] sm:$0xff] %v1274
          %1307 = vst [vmem:[#allocation2 + $0x48] sm:$0xff] %v1275
          %1308 = vst [vmem:[#allocation2 + $0x50] sm:$0xff] %v1276
          %1309 = vst [vmem:[#allocation2 + $0x58] sm:$0xff] %v1277
          %1310 = vst [vmem:[#allocation2 + $0x60] sm:$0xff] %v1278
          %1311 = vst [vmem:[#allocation2 + $0x68] sm:$0xff] %v1279
          %1312 = vst [vmem:[#allocation2 + $0x70] sm:$0xff] %v1280
          %1313 = vst [vmem:[#allocation2 + $0x78] sm:$0xff] %v1281
          %1314 = vst [vmem:[#allocation2 + $0x80] sm:$0xff] %v1282
          %1315 = vst [vmem:[#allocation2 + $0x88] sm:$0xff] %v1283
          %1316 = vst [vmem:[#allocation2 + $0x90] sm:$0xff] %v1284
          %1317 = vst [vmem:[#allocation2 + $0x98] sm:$0xff] %v1285
          %1318 = vst [vmem:[#allocation2 + $0xa0] sm:$0xff] %v1286
          %1319 = vst [vmem:[#allocation2 + $0xa8] sm:$0xff] %v1287
          %1320 = vst [vmem:[#allocation2 + $0xb0] sm:$0xff] %v1288
          %1321 = vst [vmem:[#allocation2 + $0xb8] sm:$0xff] %v1289
          %1322 = vst [vmem:[#allocation2 + $0xc0] sm:$0xff] %v1290
          %1323 = vst [vmem:[#allocation2 + $0xc8] sm:$0xff] %v1291
          %1324 = vst [vmem:[#allocation2 + $0xd0] sm:$0xff] %v1292
          %1325 = vst [vmem:[#allocation2 + $0xd8] sm:$0xff] %v1293
          %1326 = vst [vmem:[#allocation2 + $0xe0] sm:$0xff] %v1294
          %1327 = vst [vmem:[#allocation2 + $0xe8] sm:$0xff] %v1295
          %1328 = vst [vmem:[#allocation2 + $0xf0] sm:$0xff] %v1296
          %1329 = vst [vmem:[#allocation2 + $0xf8] sm:$0xff] %v1297
        $region92: #{tpu_custom_call.1} parent=67 // pred_fallthru
          _
        %p1330 = scmp.eq.s32.totalorder %s51, 1
        // Predicated region
        $region93: #{tpu_custom_call.1} parent=67 // pred_check
          %p1331 = pneg %p1330
        $region94: #{tpu_custom_call.1} parent=67 // pred_check_branch
          %1333 = sbr.rel (%p1331) target = $region96
        $region95: #{tpu_custom_call.1} parent=67 // pred_region
          %s1334 = sld [smem:[#allocation6]]
          %s1335 = sadd.f32 %s1334, 1.0
          %v1336 = vld [vmem:[%s538] sm:$0xff]
          %v1337 = vld [vmem:[%s538 + $0x8] sm:$0xff]
          %v1338 = vld [vmem:[%s538 + $0x10] sm:$0xff]
          %v1339 = vld [vmem:[%s538 + $0x18] sm:$0xff]
          %v1340 = vld [vmem:[%s538 + $0x20] sm:$0xff]
          %v1341 = vld [vmem:[%s538 + $0x28] sm:$0xff]
          %v1342 = vld [vmem:[%s538 + $0x30] sm:$0xff]
          %v1343 = vld [vmem:[%s538 + $0x38] sm:$0xff]
          %v1344 = vld [vmem:[%s538 + $0x40] sm:$0xff]
          %v1345 = vld [vmem:[%s538 + $0x48] sm:$0xff]
          %v1346 = vld [vmem:[%s538 + $0x50] sm:$0xff]
          %v1347 = vld [vmem:[%s538 + $0x58] sm:$0xff]
          %v1348 = vld [vmem:[%s538 + $0x60] sm:$0xff]
          %v1349 = vld [vmem:[%s538 + $0x68] sm:$0xff]
          %v1350 = vld [vmem:[%s538 + $0x70] sm:$0xff]
          %v1351 = vld [vmem:[%s538 + $0x78] sm:$0xff]
          %v1352 = vld [vmem:[%s538 + $0x80] sm:$0xff]
          %v1353 = vld [vmem:[%s538 + $0x88] sm:$0xff]
          %v1354 = vld [vmem:[%s538 + $0x90] sm:$0xff]
          %v1355 = vld [vmem:[%s538 + $0x98] sm:$0xff]
          %v1356 = vld [vmem:[%s538 + $0xa0] sm:$0xff]
          %v1357 = vld [vmem:[%s538 + $0xa8] sm:$0xff]
          %v1358 = vld [vmem:[%s538 + $0xb0] sm:$0xff]
          %v1359 = vld [vmem:[%s538 + $0xb8] sm:$0xff]
          %v1360 = vld [vmem:[%s538 + $0xc0] sm:$0xff]
          %v1361 = vld [vmem:[%s538 + $0xc8] sm:$0xff]
          %v1362 = vld [vmem:[%s538 + $0xd0] sm:$0xff]
          %v1363 = vld [vmem:[%s538 + $0xd8] sm:$0xff]
          %v1364 = vld [vmem:[%s538 + $0xe0] sm:$0xff]
          %v1365 = vld [vmem:[%s538 + $0xe8] sm:$0xff]
          %v1366 = vld [vmem:[%s538 + $0xf0] sm:$0xff]
          %v1367 = vld [vmem:[%s538 + $0xf8] sm:$0xff]
          %v1368 = vstv %s1335
          %v1369 = vmul.f32 %v1368, %v1336
          %v1370 = vmul.f32 %v1368, %v1337
          %v1371 = vmul.f32 %v1368, %v1338
          %v1372 = vmul.f32 %v1368, %v1339
          %v1373 = vmul.f32 %v1368, %v1340
          %v1374 = vmul.f32 %v1368, %v1341
          %v1375 = vmul.f32 %v1368, %v1342
          %v1376 = vmul.f32 %v1368, %v1343
          %v1377 = vmul.f32 %v1368, %v1344
          %v1378 = vmul.f32 %v1368, %v1345
          %v1379 = vmul.f32 %v1368, %v1346
          %v1380 = vmul.f32 %v1368, %v1347
          %v1381 = vmul.f32 %v1368, %v1348
          %v1382 = vmul.f32 %v1368, %v1349
          %v1383 = vmul.f32 %v1368, %v1350
          %v1384 = vmul.f32 %v1368, %v1351
          %v1385 = vmul.f32 %v1368, %v1352
          %v1386 = vmul.f32 %v1368, %v1353
          %v1387 = vmul.f32 %v1368, %v1354
          %v1388 = vmul.f32 %v1368, %v1355
          %v1389 = vmul.f32 %v1368, %v1356
          %v1390 = vmul.f32 %v1368, %v1357
          %v1391 = vmul.f32 %v1368, %v1358
          %v1392 = vmul.f32 %v1368, %v1359
          %v1393 = vmul.f32 %v1368, %v1360
          %v1394 = vmul.f32 %v1368, %v1361
          %v1395 = vmul.f32 %v1368, %v1362
          %v1396 = vmul.f32 %v1368, %v1363
          %v1397 = vmul.f32 %v1368, %v1364
          %v1398 = vmul.f32 %v1368, %v1365
          %v1399 = vmul.f32 %v1368, %v1366
          %v1400 = vmul.f32 %v1368, %v1367
          %v1401 = vld [vmem:[#allocation2] sm:$0xff]
          %v1402 = vld [vmem:[#allocation2 + $0x8] sm:$0xff]
          %v1403 = vld [vmem:[#allocation2 + $0x10] sm:$0xff]
          %v1404 = vld [vmem:[#allocation2 + $0x18] sm:$0xff]
          %v1405 = vld [vmem:[#allocation2 + $0x20] sm:$0xff]
          %v1406 = vld [vmem:[#allocation2 + $0x28] sm:$0xff]
          %v1407 = vld [vmem:[#allocation2 + $0x30] sm:$0xff]
          %v1408 = vld [vmem:[#allocation2 + $0x38] sm:$0xff]
          %v1409 = vld [vmem:[#allocation2 + $0x40] sm:$0xff]
          %v1410 = vld [vmem:[#allocation2 + $0x48] sm:$0xff]
          %v1411 = vld [vmem:[#allocation2 + $0x50] sm:$0xff]
          %v1412 = vld [vmem:[#allocation2 + $0x58] sm:$0xff]
          %v1413 = vld [vmem:[#allocation2 + $0x60] sm:$0xff]
          %v1414 = vld [vmem:[#allocation2 + $0x68] sm:$0xff]
          %v1415 = vld [vmem:[#allocation2 + $0x70] sm:$0xff]
          %v1416 = vld [vmem:[#allocation2 + $0x78] sm:$0xff]
          %v1417 = vld [vmem:[#allocation2 + $0x80] sm:$0xff]
          %v1418 = vld [vmem:[#allocation2 + $0x88] sm:$0xff]
          %v1419 = vld [vmem:[#allocation2 + $0x90] sm:$0xff]
          %v1420 = vld [vmem:[#allocation2 + $0x98] sm:$0xff]
          %v1421 = vld [vmem:[#allocation2 + $0xa0] sm:$0xff]
          %v1422 = vld [vmem:[#allocation2 + $0xa8] sm:$0xff]
          %v1423 = vld [vmem:[#allocation2 + $0xb0] sm:$0xff]
          %v1424 = vld [vmem:[#allocation2 + $0xb8] sm:$0xff]
          %v1425 = vld [vmem:[#allocation2 + $0xc0] sm:$0xff]
          %v1426 = vld [vmem:[#allocation2 + $0xc8] sm:$0xff]
          %v1427 = vld [vmem:[#allocation2 + $0xd0] sm:$0xff]
          %v1428 = vld [vmem:[#allocation2 + $0xd8] sm:$0xff]
          %v1429 = vld [vmem:[#allocation2 + $0xe0] sm:$0xff]
          %v1430 = vld [vmem:[#allocation2 + $0xe8] sm:$0xff]
          %v1431 = vld [vmem:[#allocation2 + $0xf0] sm:$0xff]
          %v1432 = vld [vmem:[#allocation2 + $0xf8] sm:$0xff]
          %v1433 = vadd.f32 %v1369, %v1401
          %v1434 = vadd.f32 %v1370, %v1402
          %v1435 = vadd.f32 %v1371, %v1403
          %v1436 = vadd.f32 %v1372, %v1404
          %v1437 = vadd.f32 %v1373, %v1405
          %v1438 = vadd.f32 %v1374, %v1406
          %v1439 = vadd.f32 %v1375, %v1407
          %v1440 = vadd.f32 %v1376, %v1408
          %v1441 = vadd.f32 %v1377, %v1409
          %v1442 = vadd.f32 %v1378, %v1410
          %v1443 = vadd.f32 %v1379, %v1411
          %v1444 = vadd.f32 %v1380, %v1412
          %v1445 = vadd.f32 %v1381, %v1413
          %v1446 = vadd.f32 %v1382, %v1414
          %v1447 = vadd.f32 %v1383, %v1415
          %v1448 = vadd.f32 %v1384, %v1416
          %v1449 = vadd.f32 %v1385, %v1417
          %v1450 = vadd.f32 %v1386, %v1418
          %v1451 = vadd.f32 %v1387, %v1419
          %v1452 = vadd.f32 %v1388, %v1420
          %v1453 = vadd.f32 %v1389, %v1421
          %v1454 = vadd.f32 %v1390, %v1422
          %v1455 = vadd.f32 %v1391, %v1423
          %v1456 = vadd.f32 %v1392, %v1424
          %v1457 = vadd.f32 %v1393, %v1425
          %v1458 = vadd.f32 %v1394, %v1426
          %v1459 = vadd.f32 %v1395, %v1427
          %v1460 = vadd.f32 %v1396, %v1428
          %v1461 = vadd.f32 %v1397, %v1429
          %v1462 = vadd.f32 %v1398, %v1430
          %v1463 = vadd.f32 %v1399, %v1431
          %v1464 = vadd.f32 %v1400, %v1432
          %v1465 = vld [vmem:[#allocation12] sm:$0xff]
          %v1466 = vld [vmem:[#allocation12 + $0x8] sm:$0xff]
          %v1467 = vld [vmem:[#allocation12 + $0x10] sm:$0xff]
          %v1468 = vld [vmem:[#allocation12 + $0x18] sm:$0xff]
          %v1469 = vld [vmem:[#allocation12 + $0x20] sm:$0xff]
          %v1470 = vld [vmem:[#allocation12 + $0x28] sm:$0xff]
          %v1471 = vld [vmem:[#allocation12 + $0x30] sm:$0xff]
          %v1472 = vld [vmem:[#allocation12 + $0x38] sm:$0xff]
          %v1473 = vld [vmem:[#allocation12 + $0x40] sm:$0xff]
          %v1474 = vld [vmem:[#allocation12 + $0x48] sm:$0xff]
          %v1475 = vld [vmem:[#allocation12 + $0x50] sm:$0xff]
          %v1476 = vld [vmem:[#allocation12 + $0x58] sm:$0xff]
          %v1477 = vld [vmem:[#allocation12 + $0x60] sm:$0xff]
          %v1478 = vld [vmem:[#allocation12 + $0x68] sm:$0xff]
          %v1479 = vld [vmem:[#allocation12 + $0x70] sm:$0xff]
          %v1480 = vld [vmem:[#allocation12 + $0x78] sm:$0xff]
          %v1481 = vld [vmem:[%s6] sm:$0x1]
          %v1483 = vlaneseq
          %v1484 = vshrl.u32 %v1483, 7
          %v1485 = vsub.s32 0, %v1484
          %v1486 = vrot.slane %v1481, %v1485
          %1488 = vmatprep.subr.mxu0 0.0
          %1489 = vmatpush1.msra.mxu0 %v1465
          %1490 = vmatprep.subr.mxu0 0.0
          %1491 = vmatpush1.msra.mxu0 %v1466
          %1492 = vmatprep.subr.mxu0 0.0
          %1493 = vmatpush1.msra.mxu0 %v1467
          %1494 = vmatprep.subr.mxu0 0.0
          %1495 = vmatpush1.msra.mxu0 %v1468
          %1496 = vmatprep.subr.mxu0 0.0
          %1497 = vmatpush1.msra.mxu0 %v1469
          %1498 = vmatprep.subr.mxu0 0.0
          %1499 = vmatpush1.msra.mxu0 %v1470
          %1500 = vmatprep.subr.mxu0 0.0
          %1501 = vmatpush1.msra.mxu0 %v1471
          %1502 = vmatprep.subr.mxu0 0.0
          %1503 = vmatpush1.msra.mxu0 %v1472
          %1504 = vmatprep.subr.mxu0 0.0
          %1505 = vmatpush1.msra.mxu0 %v1473
          %1506 = vmatprep.subr.mxu0 0.0
          %1507 = vmatpush1.msra.mxu0 %v1474
          %1508 = vmatprep.subr.mxu0 0.0
          %1509 = vmatpush1.msra.mxu0 %v1475
          %1510 = vmatprep.subr.mxu0 0.0
          %1511 = vmatpush1.msra.mxu0 %v1476
          %1512 = vmatprep.subr.mxu0 0.0
          %1513 = vmatpush1.msra.mxu0 %v1477
          %1514 = vmatprep.subr.mxu0 0.0
          %1515 = vmatpush1.msra.mxu0 %v1478
          %1516 = vmatprep.subr.mxu0 0.0
          %1517 = vmatpush1.msra.mxu0 %v1479
          %1518 = vmatprep.subr.mxu0 0.0
          %1519 = vmatpush1.msra.mxu0 %v1480
          %1520 = vmatprep.subr.mxu0 0.0
          %1521 = vmatpush1.msra.mxu0 0.0
          %1522 = vmatprep.subr.mxu0 0.0
          %1523 = vmatpush1.msra.mxu0 0.0
          %1524 = vmatprep.subr.mxu0 0.0
          %1525 = vmatpush1.msra.mxu0 0.0
          %1526 = vmatprep.subr.mxu0 0.0
          %1527 = vmatpush1.msra.mxu0 0.0
          %1528 = vmatprep.subr.mxu0 0.0
          %1529 = vmatpush1.msra.mxu0 0.0
          %1530 = vmatprep.subr.mxu0 0.0
          %1531 = vmatpush1.msra.mxu0 0.0
          %1532 = vmatprep.subr.mxu0 0.0
          %1533 = vmatpush1.msra.mxu0 0.0
          %1534 = vmatprep.subr.mxu0 0.0
          %1535 = vmatpush1.msra.mxu0 0.0
          %1536 = vmatprep.subr.mxu0 0.0
          %1537 = vmatpush1.msra.mxu0 0.0
          %1538 = vmatprep.subr.mxu0 0.0
          %1539 = vmatpush1.msra.mxu0 0.0
          %1540 = vmatprep.subr.mxu0 0.0
          %1541 = vmatpush1.msra.mxu0 0.0
          %1542 = vmatprep.subr.mxu0 0.0
          %1543 = vmatpush1.msra.mxu0 0.0
          %1544 = vmatprep.subr.mxu0 0.0
          %1545 = vmatpush1.msra.mxu0 0.0
          %1546 = vmatprep.subr.mxu0 0.0
          %1547 = vmatpush1.msra.mxu0 0.0
          %1548 = vmatprep.subr.mxu0 0.0
          %1549 = vmatpush1.msra.mxu0 0.0
          %1550 = vmatprep.subr.mxu0 0.0
          %1551 = vmatpush1.msra.mxu0 0.0
          %1552 = vmatprep.mubr.f32.mxu0 0.0
          %1553 = vmatmul.mubr.f32.gmra.mrb[0].mxu0 %v1433
          %v1554 = vpop.f32.mrb[0].mxu0
          %v1555 = vadd.f32 %v1486, %v1554
          %v1556 = vpop.f32.mrb[0].mxu0
          %1557 = vmatprep.mubr.f32.mxu0 0.0
          %1558 = vmatmul.mubr.f32.gmra.mrb[0].mxu0 %v1434
          %v1559 = vpop.f32.mrb[0].mxu0
          %v1560 = vadd.f32 %v1486, %v1559
          %v1561 = vpop.f32.mrb[0].mxu0
          %1562 = vmatprep.mubr.f32.mxu0 0.0
          %1563 = vmatmul.mubr.f32.gmra.mrb[0].mxu0 %v1435
          %v1564 = vpop.f32.mrb[0].mxu0
          %v1565 = vadd.f32 %v1486, %v1564
          %v1566 = vpop.f32.mrb[0].mxu0
          %1567 = vmatprep.mubr.f32.mxu0 0.0
          %1568 = vmatmul.mubr.f32.gmra.mrb[0].mxu0 %v1436
          %v1569 = vpop.f32.mrb[0].mxu0
          %v1570 = vadd.f32 %v1486, %v1569
          %v1571 = vpop.f32.mrb[0].mxu0
          %1572 = vmatprep.mubr.f32.mxu0 0.0
          %1573 = vmatmul.mubr.f32.gmra.mrb[0].mxu0 %v1437
          %v1574 = vpop.f32.mrb[0].mxu0
          %v1575 = vadd.f32 %v1486, %v1574
          %v1576 = vpop.f32.mrb[0].mxu0
          %1577 = vmatprep.mubr.f32.mxu0 0.0
          %1578 = vmatmul.mubr.f32.gmra.mrb[0].mxu0 %v1438
          %v1579 = vpop.f32.mrb[0].mxu0
          %v1580 = vadd.f32 %v1486, %v1579
          %v1581 = vpop.f32.mrb[0].mxu0
          %1582 = vmatprep.mubr.f32.mxu0 0.0
          %1583 = vmatmul.mubr.f32.gmra.mrb[0].mxu0 %v1439
          %v1584 = vpop.f32.mrb[0].mxu0
          %v1585 = vadd.f32 %v1486, %v1584
          %v1586 = vpop.f32.mrb[0].mxu0
          %1587 = vmatprep.mubr.f32.mxu0 0.0
          %1588 = vmatmul.mubr.f32.gmra.mrb[0].mxu0 %v1440
          %v1589 = vpop.f32.mrb[0].mxu0
          %v1590 = vadd.f32 %v1486, %v1589
          %v1591 = vpop.f32.mrb[0].mxu0
          %1592 = vmatprep.mubr.f32.mxu0 0.0
          %1593 = vmatmul.mubr.f32.gmra.mrb[0].mxu0 %v1441
          %v1594 = vpop.f32.mrb[0].mxu0
          %v1595 = vadd.f32 %v1486, %v1594
          %v1596 = vpop.f32.mrb[0].mxu0
          %1597 = vmatprep.mubr.f32.mxu0 0.0
          %1598 = vmatmul.mubr.f32.gmra.mrb[0].mxu0 %v1442
          %v1599 = vpop.f32.mrb[0].mxu0
          %v1600 = vadd.f32 %v1486, %v1599
          %v1601 = vpop.f32.mrb[0].mxu0
          %1602 = vmatprep.mubr.f32.mxu0 0.0
          %1603 = vmatmul.mubr.f32.gmra.mrb[0].mxu0 %v1443
          %v1604 = vpop.f32.mrb[0].mxu0
          %v1605 = vadd.f32 %v1486, %v1604
          %v1606 = vpop.f32.mrb[0].mxu0
          %1607 = vmatprep.mubr.f32.mxu0 0.0
          %1608 = vmatmul.mubr.f32.gmra.mrb[0].mxu0 %v1444
          %v1609 = vpop.f32.mrb[0].mxu0
          %v1610 = vadd.f32 %v1486, %v1609
          %v1611 = vpop.f32.mrb[0].mxu0
          %1612 = vmatprep.mubr.f32.mxu0 0.0
          %1613 = vmatmul.mubr.f32.gmra.mrb[0].mxu0 %v1445
          %v1614 = vpop.f32.mrb[0].mxu0
          %v1615 = vadd.f32 %v1486, %v1614
          %v1616 = vpop.f32.mrb[0].mxu0
          %1617 = vmatprep.mubr.f32.mxu0 0.0
          %1618 = vmatmul.mubr.f32.gmra.mrb[0].mxu0 %v1446
          %v1619 = vpop.f32.mrb[0].mxu0
          %v1620 = vadd.f32 %v1486, %v1619
          %v1621 = vpop.f32.mrb[0].mxu0
          %1622 = vmatprep.mubr.f32.mxu0 0.0
          %1623 = vmatmul.mubr.f32.gmra.mrb[0].mxu0 %v1447
          %v1624 = vpop.f32.mrb[0].mxu0
          %v1625 = vadd.f32 %v1486, %v1624
          %v1626 = vpop.f32.mrb[0].mxu0
          %1627 = vmatprep.mubr.f32.mxu0 0.0
          %1628 = vmatmul.mubr.f32.gmra.mrb[0].mxu0 %v1448
          %v1629 = vpop.f32.mrb[0].mxu0
          %v1630 = vadd.f32 %v1486, %v1629
          %v1631 = vpop.f32.mrb[0].mxu0
          %1632 = vmatprep.mubr.f32.mxu0 0.0
          %1633 = vmatmul.mubr.f32.gmra.mrb[0].mxu0 %v1449
          %v1634 = vpop.f32.mrb[0].mxu0
          %v1635 = vadd.f32 %v1486, %v1634
          %v1636 = vpop.f32.mrb[0].mxu0
          %1637 = vmatprep.mubr.f32.mxu0 0.0
          %1638 = vmatmul.mubr.f32.gmra.mrb[0].mxu0 %v1450
          %v1639 = vpop.f32.mrb[0].mxu0
          %v1640 = vadd.f32 %v1486, %v1639
          %v1641 = vpop.f32.mrb[0].mxu0
          %1642 = vmatprep.mubr.f32.mxu0 0.0
          %1643 = vmatmul.mubr.f32.gmra.mrb[0].mxu0 %v1451
          %v1644 = vpop.f32.mrb[0].mxu0
          %v1645 = vadd.f32 %v1486, %v1644
          %v1646 = vpop.f32.mrb[0].mxu0
          %1647 = vmatprep.mubr.f32.mxu0 0.0
          %1648 = vmatmul.mubr.f32.gmra.mrb[0].mxu0 %v1452
          %v1649 = vpop.f32.mrb[0].mxu0
          %v1650 = vadd.f32 %v1486, %v1649
          %v1651 = vpop.f32.mrb[0].mxu0
          %1652 = vmatprep.mubr.f32.mxu0 0.0
          %1653 = vmatmul.mubr.f32.gmra.mrb[0].mxu0 %v1453
          %v1654 = vpop.f32.mrb[0].mxu0
          %v1655 = vadd.f32 %v1486, %v1654
          %v1656 = vpop.f32.mrb[0].mxu0
          %1657 = vmatprep.mubr.f32.mxu0 0.0
          %1658 = vmatmul.mubr.f32.gmra.mrb[0].mxu0 %v1454
          %v1659 = vpop.f32.mrb[0].mxu0
          %v1660 = vadd.f32 %v1486, %v1659
          %v1661 = vpop.f32.mrb[0].mxu0
          %1662 = vmatprep.mubr.f32.mxu0 0.0
          %1663 = vmatmul.mubr.f32.gmra.mrb[0].mxu0 %v1455
          %v1664 = vpop.f32.mrb[0].mxu0
          %v1665 = vadd.f32 %v1486, %v1664
          %v1666 = vpop.f32.mrb[0].mxu0
          %1667 = vmatprep.mubr.f32.mxu0 0.0
          %1668 = vmatmul.mubr.f32.gmra.mrb[0].mxu0 %v1456
          %v1669 = vpop.f32.mrb[0].mxu0
          %v1670 = vadd.f32 %v1486, %v1669
          %v1671 = vpop.f32.mrb[0].mxu0
          %1672 = vmatprep.mubr.f32.mxu0 0.0
          %1673 = vmatmul.mubr.f32.gmra.mrb[0].mxu0 %v1457
          %v1674 = vpop.f32.mrb[0].mxu0
          %v1675 = vadd.f32 %v1486, %v1674
          %v1676 = vpop.f32.mrb[0].mxu0
          %1677 = vmatprep.mubr.f32.mxu0 0.0
          %1678 = vmatmul.mubr.f32.gmra.mrb[0].mxu0 %v1458
          %v1679 = vpop.f32.mrb[0].mxu0
          %v1680 = vadd.f32 %v1486, %v1679
          %v1681 = vpop.f32.mrb[0].mxu0
          %1682 = vmatprep.mubr.f32.mxu0 0.0
          %1683 = vmatmul.mubr.f32.gmra.mrb[0].mxu0 %v1459
          %v1684 = vpop.f32.mrb[0].mxu0
          %v1685 = vadd.f32 %v1486, %v1684
          %v1686 = vpop.f32.mrb[0].mxu0
          %1687 = vmatprep.mubr.f32.mxu0 0.0
          %1688 = vmatmul.mubr.f32.gmra.mrb[0].mxu0 %v1460
          %v1689 = vpop.f32.mrb[0].mxu0
          %v1690 = vadd.f32 %v1486, %v1689
          %v1691 = vpop.f32.mrb[0].mxu0
          %1692 = vmatprep.mubr.f32.mxu0 0.0
          %1693 = vmatmul.mubr.f32.gmra.mrb[0].mxu0 %v1461
          %v1694 = vpop.f32.mrb[0].mxu0
          %v1695 = vadd.f32 %v1486, %v1694
          %v1696 = vpop.f32.mrb[0].mxu0
          %1697 = vmatprep.mubr.f32.mxu0 0.0
          %1698 = vmatmul.mubr.f32.gmra.mrb[0].mxu0 %v1462
          %v1699 = vpop.f32.mrb[0].mxu0
          %v1700 = vadd.f32 %v1486, %v1699
          %v1701 = vpop.f32.mrb[0].mxu0
          %1702 = vmatprep.mubr.f32.mxu0 0.0
          %1703 = vmatmul.mubr.f32.gmra.mrb[0].mxu0 %v1463
          %v1704 = vpop.f32.mrb[0].mxu0
          %v1705 = vadd.f32 %v1486, %v1704
          %v1706 = vpop.f32.mrb[0].mxu0
          %1707 = vmatprep.mubr.f32.mxu0 0.0
          %1708 = vmatmul.mubr.f32.gmra.mrb[0].mxu0 %v1464
          %v1709 = vpop.f32.mrb[0].mxu0
          %v1710 = vadd.f32 %v1486, %v1709
          %v1711 = vpop.f32.mrb[0].mxu0
          %1712 = vdwg.mxu0
          %v1713 = vld [vmem:[%s7] sm:$0x1]
          %v1715 = vlaneseq
          %v1716 = vshrl.u32 %v1715, 7
          %v1717 = vsub.s32 0, %v1716
          %v1718 = vrot.slane %v1713, %v1717
          %v1720 = vmul.f32 %v1555, %v1718
          %v1721 = vmul.f32 %v1560, %v1718
          %v1722 = vmul.f32 %v1565, %v1718
          %v1723 = vmul.f32 %v1570, %v1718
          %v1724 = vmul.f32 %v1575, %v1718
          %v1725 = vmul.f32 %v1580, %v1718
          %v1726 = vmul.f32 %v1585, %v1718
          %v1727 = vmul.f32 %v1590, %v1718
          %v1728 = vmul.f32 %v1595, %v1718
          %v1729 = vmul.f32 %v1600, %v1718
          %v1730 = vmul.f32 %v1605, %v1718
          %v1731 = vmul.f32 %v1610, %v1718
          %v1732 = vmul.f32 %v1615, %v1718
          %v1733 = vmul.f32 %v1620, %v1718
          %v1734 = vmul.f32 %v1625, %v1718
          %v1735 = vmul.f32 %v1630, %v1718
          %v1736 = vmul.f32 %v1635, %v1718
          %v1737 = vmul.f32 %v1640, %v1718
          %v1738 = vmul.f32 %v1645, %v1718
          %v1739 = vmul.f32 %v1650, %v1718
          %v1740 = vmul.f32 %v1655, %v1718
          %v1741 = vmul.f32 %v1660, %v1718
          %v1742 = vmul.f32 %v1665, %v1718
          %v1743 = vmul.f32 %v1670, %v1718
          %v1744 = vmul.f32 %v1675, %v1718
          %v1745 = vmul.f32 %v1680, %v1718
          %v1746 = vmul.f32 %v1685, %v1718
          %v1747 = vmul.f32 %v1690, %v1718
          %v1748 = vmul.f32 %v1695, %v1718
          %v1749 = vmul.f32 %v1700, %v1718
          %v1750 = vmul.f32 %v1705, %v1718
          %v1751 = vmul.f32 %v1710, %v1718
          %v1752 = vld [vmem:[%s8] sm:$0x1]
          %v1754 = vlaneseq
          %v1755 = vshrl.u32 %v1754, 7
          %v1756 = vsub.s32 0, %v1755
          %v1757 = vrot.slane %v1752, %v1756
          %v1759 = vadd.f32 %v1720, %v1757
          %v1760 = vadd.f32 %v1721, %v1757
          %v1761 = vadd.f32 %v1722, %v1757
          %v1762 = vadd.f32 %v1723, %v1757
          %v1763 = vadd.f32 %v1724, %v1757
          %v1764 = vadd.f32 %v1725, %v1757
          %v1765 = vadd.f32 %v1726, %v1757
          %v1766 = vadd.f32 %v1727, %v1757
          %v1767 = vadd.f32 %v1728, %v1757
          %v1768 = vadd.f32 %v1729, %v1757
          %v1769 = vadd.f32 %v1730, %v1757
          %v1770 = vadd.f32 %v1731, %v1757
          %v1771 = vadd.f32 %v1732, %v1757
          %v1772 = vadd.f32 %v1733, %v1757
          %v1773 = vadd.f32 %v1734, %v1757
          %v1774 = vadd.f32 %v1735, %v1757
          %v1775 = vadd.f32 %v1736, %v1757
          %v1776 = vadd.f32 %v1737, %v1757
          %v1777 = vadd.f32 %v1738, %v1757
          %v1778 = vadd.f32 %v1739, %v1757
          %v1779 = vadd.f32 %v1740, %v1757
          %v1780 = vadd.f32 %v1741, %v1757
          %v1781 = vadd.f32 %v1742, %v1757
          %v1782 = vadd.f32 %v1743, %v1757
          %v1783 = vadd.f32 %v1744, %v1757
          %v1784 = vadd.f32 %v1745, %v1757
          %v1785 = vadd.f32 %v1746, %v1757
          %v1786 = vadd.f32 %v1747, %v1757
          %v1787 = vadd.f32 %v1748, %v1757
          %v1788 = vadd.f32 %v1749, %v1757
          %v1789 = vadd.f32 %v1750, %v1757
          %v1790 = vadd.f32 %v1751, %v1757
          %v1791 = vmax.f32 %v1759, 0.0
          %v1792 = vmax.f32 %v1760, 0.0
          %v1793 = vmax.f32 %v1761, 0.0
          %v1794 = vmax.f32 %v1762, 0.0
          %v1795 = vmax.f32 %v1763, 0.0
          %v1796 = vmax.f32 %v1764, 0.0
          %v1797 = vmax.f32 %v1765, 0.0
          %v1798 = vmax.f32 %v1766, 0.0
          %v1799 = vmax.f32 %v1767, 0.0
          %v1800 = vmax.f32 %v1768, 0.0
          %v1801 = vmax.f32 %v1769, 0.0
          %v1802 = vmax.f32 %v1770, 0.0
          %v1803 = vmax.f32 %v1771, 0.0
          %v1804 = vmax.f32 %v1772, 0.0
          %v1805 = vmax.f32 %v1773, 0.0
          %v1806 = vmax.f32 %v1774, 0.0
          %v1807 = vmax.f32 %v1775, 0.0
          %v1808 = vmax.f32 %v1776, 0.0
          %v1809 = vmax.f32 %v1777, 0.0
          %v1810 = vmax.f32 %v1778, 0.0
          %v1811 = vmax.f32 %v1779, 0.0
          %v1812 = vmax.f32 %v1780, 0.0
          %v1813 = vmax.f32 %v1781, 0.0
          %v1814 = vmax.f32 %v1782, 0.0
          %v1815 = vmax.f32 %v1783, 0.0
          %v1816 = vmax.f32 %v1784, 0.0
          %v1817 = vmax.f32 %v1785, 0.0
          %v1818 = vmax.f32 %v1786, 0.0
          %v1819 = vmax.f32 %v1787, 0.0
          %v1820 = vmax.f32 %v1788, 0.0
          %v1821 = vmax.f32 %v1789, 0.0
          %v1822 = vmax.f32 %v1790, 0.0
          %v1823 = vld [vmem:[#allocation13] sm:$0xff]
          %v1824 = vld [vmem:[#allocation13 + $0x8] sm:$0xff]
          %v1825 = vld [vmem:[#allocation13 + $0x10] sm:$0xff]
          %v1826 = vld [vmem:[#allocation13 + $0x18] sm:$0xff]
          %v1827 = vld [vmem:[#allocation13 + $0x20] sm:$0xff]
          %v1828 = vld [vmem:[#allocation13 + $0x28] sm:$0xff]
          %v1829 = vld [vmem:[#allocation13 + $0x30] sm:$0xff]
          %v1830 = vld [vmem:[#allocation13 + $0x38] sm:$0xff]
          %v1831 = vld [vmem:[#allocation13 + $0x40] sm:$0xff]
          %v1832 = vld [vmem:[#allocation13 + $0x48] sm:$0xff]
          %v1833 = vld [vmem:[#allocation13 + $0x50] sm:$0xff]
          %v1834 = vld [vmem:[#allocation13 + $0x58] sm:$0xff]
          %v1835 = vld [vmem:[#allocation13 + $0x60] sm:$0xff]
          %v1836 = vld [vmem:[#allocation13 + $0x68] sm:$0xff]
          %v1837 = vld [vmem:[#allocation13 + $0x70] sm:$0xff]
          %v1838 = vld [vmem:[#allocation13 + $0x78] sm:$0xff]
          %v1839 = vld [vmem:[%s10] sm:$0x1]
          %v1841 = vlaneseq
          %v1842 = vshrl.u32 %v1841, 7
          %v1843 = vsub.s32 0, %v1842
          %v1844 = vrot.slane %v1839, %v1843
          %1846 = vmatprep.subr.mxu0 0.0
          %1847 = vmatpush1.msra.mxu0 %v1823
          %1848 = vmatprep.subr.mxu0 0.0
          %1849 = vmatpush1.msra.mxu0 %v1824
          %1850 = vmatprep.subr.mxu0 0.0
          %1851 = vmatpush1.msra.mxu0 %v1825
          %1852 = vmatprep.subr.mxu0 0.0
          %1853 = vmatpush1.msra.mxu0 %v1826
          %1854 = vmatprep.subr.mxu0 0.0
          %1855 = vmatpush1.msra.mxu0 %v1827
          %1856 = vmatprep.subr.mxu0 0.0
          %1857 = vmatpush1.msra.mxu0 %v1828
          %1858 = vmatprep.subr.mxu0 0.0
          %1859 = vmatpush1.msra.mxu0 %v1829
          %1860 = vmatprep.subr.mxu0 0.0
          %1861 = vmatpush1.msra.mxu0 %v1830
          %1862 = vmatprep.subr.mxu0 0.0
          %1863 = vmatpush1.msra.mxu0 %v1831
          %1864 = vmatprep.subr.mxu0 0.0
          %1865 = vmatpush1.msra.mxu0 %v1832
          %1866 = vmatprep.subr.mxu0 0.0
          %1867 = vmatpush1.msra.mxu0 %v1833
          %1868 = vmatprep.subr.mxu0 0.0
          %1869 = vmatpush1.msra.mxu0 %v1834
          %1870 = vmatprep.subr.mxu0 0.0
          %1871 = vmatpush1.msra.mxu0 %v1835
          %1872 = vmatprep.subr.mxu0 0.0
          %1873 = vmatpush1.msra.mxu0 %v1836
          %1874 = vmatprep.subr.mxu0 0.0
          %1875 = vmatpush1.msra.mxu0 %v1837
          %1876 = vmatprep.subr.mxu0 0.0
          %1877 = vmatpush1.msra.mxu0 %v1838
          %1878 = vmatprep.subr.mxu0 0.0
          %1879 = vmatpush1.msra.mxu0 0.0
          %1880 = vmatprep.subr.mxu0 0.0
          %1881 = vmatpush1.msra.mxu0 0.0
          %1882 = vmatprep.subr.mxu0 0.0
          %1883 = vmatpush1.msra.mxu0 0.0
          %1884 = vmatprep.subr.mxu0 0.0
          %1885 = vmatpush1.msra.mxu0 0.0
          %1886 = vmatprep.subr.mxu0 0.0
          %1887 = vmatpush1.msra.mxu0 0.0
          %1888 = vmatprep.subr.mxu0 0.0
          %1889 = vmatpush1.msra.mxu0 0.0
          %1890 = vmatprep.subr.mxu0 0.0
          %1891 = vmatpush1.msra.mxu0 0.0
          %1892 = vmatprep.subr.mxu0 0.0
          %1893 = vmatpush1.msra.mxu0 0.0
          %1894 = vmatprep.subr.mxu0 0.0
          %1895 = vmatpush1.msra.mxu0 0.0
          %1896 = vmatprep.subr.mxu0 0.0
          %1897 = vmatpush1.msra.mxu0 0.0
          %1898 = vmatprep.subr.mxu0 0.0
          %1899 = vmatpush1.msra.mxu0 0.0
          %1900 = vmatprep.subr.mxu0 0.0
          %1901 = vmatpush1.msra.mxu0 0.0
          %1902 = vmatprep.subr.mxu0 0.0
          %1903 = vmatpush1.msra.mxu0 0.0
          %1904 = vmatprep.subr.mxu0 0.0
          %1905 = vmatpush1.msra.mxu0 0.0
          %1906 = vmatprep.subr.mxu0 0.0
          %1907 = vmatpush1.msra.mxu0 0.0
          %1908 = vmatprep.subr.mxu0 0.0
          %1909 = vmatpush1.msra.mxu0 0.0
          %1910 = vmatprep.mubr.f32.mxu0 0.0
          %1911 = vmatmul.mubr.f32.gmra.mrb[0].mxu0 %v1791
          %v1912 = vpop.f32.mrb[0].mxu0
          %v1913 = vadd.f32 %v1844, %v1912
          %v1914 = vpop.f32.mrb[0].mxu0
          %1915 = vmatprep.mubr.f32.mxu0 0.0
          %1916 = vmatmul.mubr.f32.gmra.mrb[0].mxu0 %v1792
          %v1917 = vpop.f32.mrb[0].mxu0
          %v1918 = vadd.f32 %v1844, %v1917
          %v1919 = vpop.f32.mrb[0].mxu0
          %1920 = vmatprep.mubr.f32.mxu0 0.0
          %1921 = vmatmul.mubr.f32.gmra.mrb[0].mxu0 %v1793
          %v1922 = vpop.f32.mrb[0].mxu0
          %v1923 = vadd.f32 %v1844, %v1922
          %v1924 = vpop.f32.mrb[0].mxu0
          %1925 = vmatprep.mubr.f32.mxu0 0.0
          %1926 = vmatmul.mubr.f32.gmra.mrb[0].mxu0 %v1794
          %v1927 = vpop.f32.mrb[0].mxu0
          %v1928 = vadd.f32 %v1844, %v1927
          %v1929 = vpop.f32.mrb[0].mxu0
          %1930 = vmatprep.mubr.f32.mxu0 0.0
          %1931 = vmatmul.mubr.f32.gmra.mrb[0].mxu0 %v1795
          %v1932 = vpop.f32.mrb[0].mxu0
          %v1933 = vadd.f32 %v1844, %v1932
          %v1934 = vpop.f32.mrb[0].mxu0
          %1935 = vmatprep.mubr.f32.mxu0 0.0
          %1936 = vmatmul.mubr.f32.gmra.mrb[0].mxu0 %v1796
          %v1937 = vpop.f32.mrb[0].mxu0
          %v1938 = vadd.f32 %v1844, %v1937
          %v1939 = vpop.f32.mrb[0].mxu0
          %1940 = vmatprep.mubr.f32.mxu0 0.0
          %1941 = vmatmul.mubr.f32.gmra.mrb[0].mxu0 %v1797
          %v1942 = vpop.f32.mrb[0].mxu0
          %v1943 = vadd.f32 %v1844, %v1942
          %v1944 = vpop.f32.mrb[0].mxu0
          %1945 = vmatprep.mubr.f32.mxu0 0.0
          %1946 = vmatmul.mubr.f32.gmra.mrb[0].mxu0 %v1798
          %v1947 = vpop.f32.mrb[0].mxu0
          %v1948 = vadd.f32 %v1844, %v1947
          %v1949 = vpop.f32.mrb[0].mxu0
          %1950 = vmatprep.mubr.f32.mxu0 0.0
          %1951 = vmatmul.mubr.f32.gmra.mrb[0].mxu0 %v1799
          %v1952 = vpop.f32.mrb[0].mxu0
          %v1953 = vadd.f32 %v1844, %v1952
          %v1954 = vpop.f32.mrb[0].mxu0
          %1955 = vmatprep.mubr.f32.mxu0 0.0
          %1956 = vmatmul.mubr.f32.gmra.mrb[0].mxu0 %v1800
          %v1957 = vpop.f32.mrb[0].mxu0
          %v1958 = vadd.f32 %v1844, %v1957
          %v1959 = vpop.f32.mrb[0].mxu0
          %1960 = vmatprep.mubr.f32.mxu0 0.0
          %1961 = vmatmul.mubr.f32.gmra.mrb[0].mxu0 %v1801
          %v1962 = vpop.f32.mrb[0].mxu0
          %v1963 = vadd.f32 %v1844, %v1962
          %v1964 = vpop.f32.mrb[0].mxu0
          %1965 = vmatprep.mubr.f32.mxu0 0.0
          %1966 = vmatmul.mubr.f32.gmra.mrb[0].mxu0 %v1802
          %v1967 = vpop.f32.mrb[0].mxu0
          %v1968 = vadd.f32 %v1844, %v1967
          %v1969 = vpop.f32.mrb[0].mxu0
          %1970 = vmatprep.mubr.f32.mxu0 0.0
          %1971 = vmatmul.mubr.f32.gmra.mrb[0].mxu0 %v1803
          %v1972 = vpop.f32.mrb[0].mxu0
          %v1973 = vadd.f32 %v1844, %v1972
          %v1974 = vpop.f32.mrb[0].mxu0
          %1975 = vmatprep.mubr.f32.mxu0 0.0
          %1976 = vmatmul.mubr.f32.gmra.mrb[0].mxu0 %v1804
          %v1977 = vpop.f32.mrb[0].mxu0
          %v1978 = vadd.f32 %v1844, %v1977
          %v1979 = vpop.f32.mrb[0].mxu0
          %1980 = vmatprep.mubr.f32.mxu0 0.0
          %1981 = vmatmul.mubr.f32.gmra.mrb[0].mxu0 %v1805
          %v1982 = vpop.f32.mrb[0].mxu0
          %v1983 = vadd.f32 %v1844, %v1982
          %v1984 = vpop.f32.mrb[0].mxu0
          %1985 = vmatprep.mubr.f32.mxu0 0.0
          %1986 = vmatmul.mubr.f32.gmra.mrb[0].mxu0 %v1806
          %v1987 = vpop.f32.mrb[0].mxu0
          %v1988 = vadd.f32 %v1844, %v1987
          %v1989 = vpop.f32.mrb[0].mxu0
          %1990 = vmatprep.mubr.f32.mxu0 0.0
          %1991 = vmatmul.mubr.f32.gmra.mrb[0].mxu0 %v1807
          %v1992 = vpop.f32.mrb[0].mxu0
          %v1993 = vadd.f32 %v1844, %v1992
          %v1994 = vpop.f32.mrb[0].mxu0
          %1995 = vmatprep.mubr.f32.mxu0 0.0
          %1996 = vmatmul.mubr.f32.gmra.mrb[0].mxu0 %v1808
          %v1997 = vpop.f32.mrb[0].mxu0
          %v1998 = vadd.f32 %v1844, %v1997
          %v1999 = vpop.f32.mrb[0].mxu0
          %2000 = vmatprep.mubr.f32.mxu0 0.0
          %2001 = vmatmul.mubr.f32.gmra.mrb[0].mxu0 %v1809
          %v2002 = vpop.f32.mrb[0].mxu0
          %v2003 = vadd.f32 %v1844, %v2002
          %v2004 = vpop.f32.mrb[0].mxu0
          %2005 = vmatprep.mubr.f32.mxu0 0.0
          %2006 = vmatmul.mubr.f32.gmra.mrb[0].mxu0 %v1810
          %v2007 = vpop.f32.mrb[0].mxu0
          %v2008 = vadd.f32 %v1844, %v2007
          %v2009 = vpop.f32.mrb[0].mxu0
          %2010 = vmatprep.mubr.f32.mxu0 0.0
          %2011 = vmatmul.mubr.f32.gmra.mrb[0].mxu0 %v1811
          %v2012 = vpop.f32.mrb[0].mxu0
          %v2013 = vadd.f32 %v1844, %v2012
          %v2014 = vpop.f32.mrb[0].mxu0
          %2015 = vmatprep.mubr.f32.mxu0 0.0
          %2016 = vmatmul.mubr.f32.gmra.mrb[0].mxu0 %v1812
          %v2017 = vpop.f32.mrb[0].mxu0
          %v2018 = vadd.f32 %v1844, %v2017
          %v2019 = vpop.f32.mrb[0].mxu0
          %2020 = vmatprep.mubr.f32.mxu0 0.0
          %2021 = vmatmul.mubr.f32.gmra.mrb[0].mxu0 %v1813
          %v2022 = vpop.f32.mrb[0].mxu0
          %v2023 = vadd.f32 %v1844, %v2022
          %v2024 = vpop.f32.mrb[0].mxu0
          %2025 = vmatprep.mubr.f32.mxu0 0.0
          %2026 = vmatmul.mubr.f32.gmra.mrb[0].mxu0 %v1814
          %v2027 = vpop.f32.mrb[0].mxu0
          %v2028 = vadd.f32 %v1844, %v2027
          %v2029 = vpop.f32.mrb[0].mxu0
          %2030 = vmatprep.mubr.f32.mxu0 0.0
          %2031 = vmatmul.mubr.f32.gmra.mrb[0].mxu0 %v1815
          %v2032 = vpop.f32.mrb[0].mxu0
          %v2033 = vadd.f32 %v1844, %v2032
          %v2034 = vpop.f32.mrb[0].mxu0
          %2035 = vmatprep.mubr.f32.mxu0 0.0
          %2036 = vmatmul.mubr.f32.gmra.mrb[0].mxu0 %v1816
          %v2037 = vpop.f32.mrb[0].mxu0
          %v2038 = vadd.f32 %v1844, %v2037
          %v2039 = vpop.f32.mrb[0].mxu0
          %2040 = vmatprep.mubr.f32.mxu0 0.0
          %2041 = vmatmul.mubr.f32.gmra.mrb[0].mxu0 %v1817
          %v2042 = vpop.f32.mrb[0].mxu0
          %v2043 = vadd.f32 %v1844, %v2042
          %v2044 = vpop.f32.mrb[0].mxu0
          %2045 = vmatprep.mubr.f32.mxu0 0.0
          %2046 = vmatmul.mubr.f32.gmra.mrb[0].mxu0 %v1818
          %v2047 = vpop.f32.mrb[0].mxu0
          %v2048 = vadd.f32 %v1844, %v2047
          %v2049 = vpop.f32.mrb[0].mxu0
          %2050 = vmatprep.mubr.f32.mxu0 0.0
          %2051 = vmatmul.mubr.f32.gmra.mrb[0].mxu0 %v1819
          %v2052 = vpop.f32.mrb[0].mxu0
          %v2053 = vadd.f32 %v1844, %v2052
          %v2054 = vpop.f32.mrb[0].mxu0
          %2055 = vmatprep.mubr.f32.mxu0 0.0
          %2056 = vmatmul.mubr.f32.gmra.mrb[0].mxu0 %v1820
          %v2057 = vpop.f32.mrb[0].mxu0
          %v2058 = vadd.f32 %v1844, %v2057
          %v2059 = vpop.f32.mrb[0].mxu0
          %2060 = vmatprep.mubr.f32.mxu0 0.0
          %2061 = vmatmul.mubr.f32.gmra.mrb[0].mxu0 %v1821
          %v2062 = vpop.f32.mrb[0].mxu0
          %v2063 = vadd.f32 %v1844, %v2062
          %v2064 = vpop.f32.mrb[0].mxu0
          %2065 = vmatprep.mubr.f32.mxu0 0.0
          %2066 = vmatmul.mubr.f32.gmra.mrb[0].mxu0 %v1822
          %v2067 = vpop.f32.mrb[0].mxu0
          %v2068 = vadd.f32 %v1844, %v2067
          %v2069 = vpop.f32.mrb[0].mxu0
          %2070 = vdwg.mxu0
          %v2071 = vld [vmem:[%s11] sm:$0x1]
          %v2073 = vlaneseq
          %v2074 = vshrl.u32 %v2073, 7
          %v2075 = vsub.s32 0, %v2074
          %v2076 = vrot.slane %v2071, %v2075
          %v2078 = vmul.f32 %v1913, %v2076
          %v2079 = vmul.f32 %v1918, %v2076
          %v2080 = vmul.f32 %v1923, %v2076
          %v2081 = vmul.f32 %v1928, %v2076
          %v2082 = vmul.f32 %v1933, %v2076
          %v2083 = vmul.f32 %v1938, %v2076
          %v2084 = vmul.f32 %v1943, %v2076
          %v2085 = vmul.f32 %v1948, %v2076
          %v2086 = vmul.f32 %v1953, %v2076
          %v2087 = vmul.f32 %v1958, %v2076
          %v2088 = vmul.f32 %v1963, %v2076
          %v2089 = vmul.f32 %v1968, %v2076
          %v2090 = vmul.f32 %v1973, %v2076
          %v2091 = vmul.f32 %v1978, %v2076
          %v2092 = vmul.f32 %v1983, %v2076
          %v2093 = vmul.f32 %v1988, %v2076
          %v2094 = vmul.f32 %v1993, %v2076
          %v2095 = vmul.f32 %v1998, %v2076
          %v2096 = vmul.f32 %v2003, %v2076
          %v2097 = vmul.f32 %v2008, %v2076
          %v2098 = vmul.f32 %v2013, %v2076
          %v2099 = vmul.f32 %v2018, %v2076
          %v2100 = vmul.f32 %v2023, %v2076
          %v2101 = vmul.f32 %v2028, %v2076
          %v2102 = vmul.f32 %v2033, %v2076
          %v2103 = vmul.f32 %v2038, %v2076
          %v2104 = vmul.f32 %v2043, %v2076
          %v2105 = vmul.f32 %v2048, %v2076
          %v2106 = vmul.f32 %v2053, %v2076
          %v2107 = vmul.f32 %v2058, %v2076
          %v2108 = vmul.f32 %v2063, %v2076
          %v2109 = vmul.f32 %v2068, %v2076
          %v2110 = vld [vmem:[%s12] sm:$0x1]
          %v2112 = vlaneseq
          %v2113 = vshrl.u32 %v2112, 7
          %v2114 = vsub.s32 0, %v2113
          %v2115 = vrot.slane %v2110, %v2114
          %v2117 = vadd.f32 %v2078, %v2115
          %v2118 = vadd.f32 %v2079, %v2115
          %v2119 = vadd.f32 %v2080, %v2115
          %v2120 = vadd.f32 %v2081, %v2115
          %v2121 = vadd.f32 %v2082, %v2115
          %v2122 = vadd.f32 %v2083, %v2115
          %v2123 = vadd.f32 %v2084, %v2115
          %v2124 = vadd.f32 %v2085, %v2115
          %v2125 = vadd.f32 %v2086, %v2115
          %v2126 = vadd.f32 %v2087, %v2115
          %v2127 = vadd.f32 %v2088, %v2115
          %v2128 = vadd.f32 %v2089, %v2115
          %v2129 = vadd.f32 %v2090, %v2115
          %v2130 = vadd.f32 %v2091, %v2115
          %v2131 = vadd.f32 %v2092, %v2115
          %v2132 = vadd.f32 %v2093, %v2115
          %v2133 = vadd.f32 %v2094, %v2115
          %v2134 = vadd.f32 %v2095, %v2115
          %v2135 = vadd.f32 %v2096, %v2115
          %v2136 = vadd.f32 %v2097, %v2115
          %v2137 = vadd.f32 %v2098, %v2115
          %v2138 = vadd.f32 %v2099, %v2115
          %v2139 = vadd.f32 %v2100, %v2115
          %v2140 = vadd.f32 %v2101, %v2115
          %v2141 = vadd.f32 %v2102, %v2115
          %v2142 = vadd.f32 %v2103, %v2115
          %v2143 = vadd.f32 %v2104, %v2115
          %v2144 = vadd.f32 %v2105, %v2115
          %v2145 = vadd.f32 %v2106, %v2115
          %v2146 = vadd.f32 %v2107, %v2115
          %v2147 = vadd.f32 %v2108, %v2115
          %v2148 = vadd.f32 %v2109, %v2115
          %v2149 = vmax.f32 %v2117, 0.0
          %v2150 = vmax.f32 %v2118, 0.0
          %v2151 = vmax.f32 %v2119, 0.0
          %v2152 = vmax.f32 %v2120, 0.0
          %v2153 = vmax.f32 %v2121, 0.0
          %v2154 = vmax.f32 %v2122, 0.0
          %v2155 = vmax.f32 %v2123, 0.0
          %v2156 = vmax.f32 %v2124, 0.0
          %v2157 = vmax.f32 %v2125, 0.0
          %v2158 = vmax.f32 %v2126, 0.0
          %v2159 = vmax.f32 %v2127, 0.0
          %v2160 = vmax.f32 %v2128, 0.0
          %v2161 = vmax.f32 %v2129, 0.0
          %v2162 = vmax.f32 %v2130, 0.0
          %v2163 = vmax.f32 %v2131, 0.0
          %v2164 = vmax.f32 %v2132, 0.0
          %v2165 = vmax.f32 %v2133, 0.0
          %v2166 = vmax.f32 %v2134, 0.0
          %v2167 = vmax.f32 %v2135, 0.0
          %v2168 = vmax.f32 %v2136, 0.0
          %v2169 = vmax.f32 %v2137, 0.0
          %v2170 = vmax.f32 %v2138, 0.0
          %v2171 = vmax.f32 %v2139, 0.0
          %v2172 = vmax.f32 %v2140, 0.0
          %v2173 = vmax.f32 %v2141, 0.0
          %v2174 = vmax.f32 %v2142, 0.0
          %v2175 = vmax.f32 %v2143, 0.0
          %v2176 = vmax.f32 %v2144, 0.0
          %v2177 = vmax.f32 %v2145, 0.0
          %v2178 = vmax.f32 %v2146, 0.0
          %v2179 = vmax.f32 %v2147, 0.0
          %v2180 = vmax.f32 %v2148, 0.0
          %2181 = vst [vmem:[%s603] sm:$0xff] %v2149
          %2182 = vst [vmem:[%s603 + $0x8] sm:$0xff] %v2150
          %2183 = vst [vmem:[%s603 + $0x10] sm:$0xff] %v2151
          %2184 = vst [vmem:[%s603 + $0x18] sm:$0xff] %v2152
          %2185 = vst [vmem:[%s603 + $0x20] sm:$0xff] %v2153
          %2186 = vst [vmem:[%s603 + $0x28] sm:$0xff] %v2154
          %2187 = vst [vmem:[%s603 + $0x30] sm:$0xff] %v2155
          %2188 = vst [vmem:[%s603 + $0x38] sm:$0xff] %v2156
          %2189 = vst [vmem:[%s603 + $0x40] sm:$0xff] %v2157
          %2190 = vst [vmem:[%s603 + $0x48] sm:$0xff] %v2158
          %2191 = vst [vmem:[%s603 + $0x50] sm:$0xff] %v2159
          %2192 = vst [vmem:[%s603 + $0x58] sm:$0xff] %v2160
          %2193 = vst [vmem:[%s603 + $0x60] sm:$0xff] %v2161
          %2194 = vst [vmem:[%s603 + $0x68] sm:$0xff] %v2162
          %2195 = vst [vmem:[%s603 + $0x70] sm:$0xff] %v2163
          %2196 = vst [vmem:[%s603 + $0x78] sm:$0xff] %v2164
          %2197 = vst [vmem:[%s603 + $0x80] sm:$0xff] %v2165
          %2198 = vst [vmem:[%s603 + $0x88] sm:$0xff] %v2166
          %2199 = vst [vmem:[%s603 + $0x90] sm:$0xff] %v2167
          %2200 = vst [vmem:[%s603 + $0x98] sm:$0xff] %v2168
          %2201 = vst [vmem:[%s603 + $0xa0] sm:$0xff] %v2169
          %2202 = vst [vmem:[%s603 + $0xa8] sm:$0xff] %v2170
          %2203 = vst [vmem:[%s603 + $0xb0] sm:$0xff] %v2171
          %2204 = vst [vmem:[%s603 + $0xb8] sm:$0xff] %v2172
          %2205 = vst [vmem:[%s603 + $0xc0] sm:$0xff] %v2173
          %2206 = vst [vmem:[%s603 + $0xc8] sm:$0xff] %v2174
          %2207 = vst [vmem:[%s603 + $0xd0] sm:$0xff] %v2175
          %2208 = vst [vmem:[%s603 + $0xd8] sm:$0xff] %v2176
          %2209 = vst [vmem:[%s603 + $0xe0] sm:$0xff] %v2177
          %2210 = vst [vmem:[%s603 + $0xe8] sm:$0xff] %v2178
          %2211 = vst [vmem:[%s603 + $0xf0] sm:$0xff] %v2179
          %2212 = vst [vmem:[%s603 + $0xf8] sm:$0xff] %v2180
        $region96: #{tpu_custom_call.1} parent=67 // pred_fallthru
          _
        %s2213 = sand.u32 %s365, 1
        %s2214 = scalar_lea.sflag [#allocation9], %s2213
        %s2215 = sand.u32 %s365, 1
        %s2216 = smul.addr %s2215, 256
        %s2217 = scalar_lea.vmem [#allocation15], %s2216
        // Predicated region
        $region97: #{tpu_custom_call.1} parent=67 // pred_check
          %p2218 = pneg %p375
        $region98: #{tpu_custom_call.1} parent=67 // pred_check_branch
          %2220 = sbr.rel (%p2218) target = $region100
        $region99: #{tpu_custom_call.1} parent=67 // pred_region
          %s2221 = smul.u32 32, %s50
          %s2223 = ssub.s32 4096, 4096
          %2224 = vsyncadd %s2214, %s2223
          %s2225 = smul.addr %s2221, 128
          %s2226 = scalar_lea.hbm %s14, %s2225
          %s2227 = sshll.u32 %s2217, 4
          %s2228 = int_to_ptr.vmem [resolvable:$true] %s2227
          %2233 = dma.vmem_to_hbm [thread:$0]  %s2228, 4096, %s2226, %s2214, 128, 128, 8
        $region100: #{tpu_custom_call.1} parent=67 // pred_fallthru
          _
      $region68: #{tpu_custom_call.1} parent=5 // pred_fallthru
        _
      %p2234 = scmp.le.s32.totalorder 2, %s41
      // Predicated region
      $region101: #{tpu_custom_call.1} parent=5 // pred_check
        %p2235 = pneg %p2234
      $region102: #{tpu_custom_call.1} parent=5 // pred_check_branch
        %2237 = sbr.rel (%p2235) target = $region104
      $region103: #{tpu_custom_call.1} parent=5 // pred_region
        %s2238 = ssub.s32 %s41, 2
        // Predicated region
        $region105: #{tpu_custom_call.1} parent=103 // pred_check
          %p2239 = pneg %p381
        $region106: #{tpu_custom_call.1} parent=103 // pred_check_branch
          %2241 = sbr.rel (%p2239) target = $region108
        $region107: #{tpu_custom_call.1} parent=103 // pred_region
          %s2242 = sand.u32 %s366, 1
          %s2243 = scalar_lea.sflag [#allocation9], %s2242
          %s2244 = sand.u32 %s366, 1
          %s2245 = smul.addr %s2244, 256
          %s2246 = scalar_lea.vmem [#allocation15], %s2245
          %2247 = dma.done %s2243, 4096
        $region108: #{tpu_custom_call.1} parent=103 // pred_fallthru
          _
      $region104: #{tpu_custom_call.1} parent=5 // pred_fallthru
        _
    $region6: #{tpu_custom_call.1} parent=1 // loop_footer
      %s45 = sadd.s32 1, %s41
    $region7: #{tpu_custom_call.1} parent=1 // loop_footer_branch
      %40 = sbr.rel target = $region3
    $region8: #{tpu_custom_call.1} parent=1 // loop_exit
      _
    %2248 = vsyncpa [#allocation8], 1
    %s2249 = scalar_lea.sflag [#allocation8], 1
    %2250 = vsyncpa %s2249, 1
    %2251 = vsyncpa [#allocation11], 1
    %s2252 = scalar_lea.sflag [#allocation11], 1
    %2253 = vsyncpa %s2252, 1
    %2254 = vsyncpa [#allocation14], 1
    %2255 = vsyncpa [#allocation9], 1
    %s2256 = scalar_lea.sflag [#allocation9], 1
    %2257 = vsyncpa %s2256, 1

</llo_original>
